<compile_context>
chip_gen: v6e
topology: v6e:2x2x1
jax: 0.10.0
libtpu: 0.0.40
codegen_flags: <defaults>
</compile_context>

<pallas_src>
import functools

import jax
import jax.numpy as jnp
from jax import lax
from jax.experimental import pallas as pl
from jax.experimental.pallas import tpu as pltpu
import numpy as np


def _lstm_mlp_kernel(x_ref, wih_ref, whh_ref, b_ref,
                     w1_ref, b1_ref, w2_ref, b2_ref,
                     w3_ref, b3_ref, w4_ref, b4_ref,
                     out_ref, *, T, B):
    H = whh_ref.shape[0]
    FH = 4 * H

    # ---- single hoisted input projection over the whole sequence ----------
    # x_ref is time-major flat: row t*B + b corresponds to (t, b).
    # i/f/o columns of wih/whh/bias were pre-scaled by 0.5 at init so that one
    # tanh per step implements both tanh (g gate) and sigmoid (i/f/o gates).
    xp = (jnp.dot(x_ref[...], wih_ref[...], preferred_element_type=jnp.float32)
          + b_ref[...])                                       # (T*B, 4H)

    whh = whh_ref[...]                                        # (H, 4H)

    # ---- gate lane mask (g lanes keep tanh; i/f/o lanes -> 0.5*(tanh+1)) --
    lane = lax.broadcasted_iota(jnp.int32, (B, FH), 1)
    is_g = (lane >= 2 * H) & (lane < 3 * H)

    # ---- time recurrence, fully unrolled; h / c carried in registers ------
    h = jnp.zeros((B, H), jnp.float32)
    c = jnp.zeros((B, H), jnp.float32)
    for t in range(T):
        gates = xp[t * B:(t + 1) * B, :] + jnp.dot(
            h, whh, preferred_element_type=jnp.float32)       # (B, 4H)
        th = jnp.tanh(gates)                                  # one EUP pass / step
        act = jnp.where(is_g, th, 0.5 * (th + 1.0))           # sigmoid on i/f/o lanes
        i = act[:, 0 * H:1 * H]
        f = act[:, 1 * H:2 * H]
        g = act[:, 2 * H:3 * H]
        o = act[:, 3 * H:4 * H]
        c = f * c + i * g
        h = o * jnp.tanh(c)

    # ---- dense head on the last-timestep hidden state ----------------------
    y = jnp.maximum(
        jnp.dot(h, w1_ref[...], preferred_element_type=jnp.float32) + b1_ref[...], 0.0)
    y = jnp.maximum(
        jnp.dot(y, w2_ref[...], preferred_element_type=jnp.float32) + b2_ref[...], 0.0)
    y = jnp.maximum(
        jnp.dot(y, w3_ref[...], preferred_element_type=jnp.float32) + b3_ref[...], 0.0)
    y = jnp.dot(y, w4_ref[...], preferred_element_type=jnp.float32) + b4_ref[...]
    out_ref[...] = y.astype(out_ref.dtype)


def landmark_lstm_forward(x_btd, params):
    """x_btd: (B, T, D) float32, PyTorch batch_first convention."""
    B, T, D = x_btd.shape
    H = params["whh_t"].shape[0]
    out_dim = params["w4_t"].shape[1]

    # Time-major flat layout: row t*B + b of x_flat is timestep t, batch b.
    # The array is ~1 KiB, so this wrapper-side transpose is negligible and
    # makes every per-step gate fetch a contiguous static sublane slice.
    x_flat = jnp.transpose(x_btd, (1, 0, 2)).reshape(T * B, D)

    weight_args = (params["wih_s"], params["whh_s"], params["bg_s"],
                   params["w1_t"], params["b1"], params["w2_t"], params["b2"],
                   params["w3_t"], params["b3"], params["w4_t"], params["b4"])

    # Everything is tiny (a few KiB): whole arrays resident in VMEM, no grid.
    vmem = pl.BlockSpec(memory_space=pltpu.MemorySpace.VMEM)

    # Advisory cost estimate so XLA schedules this small custom call sensibly.
    flops = (2 * T * B * D * 4 * H            # hoisted input projection
             + 2 * B * T * H * 4 * H          # recurrent projection
             + 14 * B * T * H                 # gate affine / cell elementwise
             + 2 * B * (H * 128 + 128 * 64 + 64 * 32 + 32 * out_dim))  # MLP head
    transcendentals = B * T * (4 * H + H)     # full-width tanh + tanh(c) per step
    bytes_accessed = 4 * (T * B * D
                          + sum(int(np.prod(w.shape)) for w in weight_args)
                          + B * out_dim)

    return pl.pallas_call(
        functools.partial(_lstm_mlp_kernel, T=T, B=B),
        out_shape=jax.ShapeDtypeStruct((B, out_dim), jnp.float32),
        in_specs=[vmem] * (1 + len(weight_args)),
        out_specs=vmem,
        cost_estimate=pl.CostEstimate(flops=flops,
                                      transcendentals=transcendentals,
                                      bytes_accessed=bytes_accessed),
    )(x_flat, *weight_args)


def init_params(key, input_shape, hidden_shape, output_shape):
    """Deterministic synthetic parameters mirroring nn.LSTM / nn.Linear shapes."""
    ks = jax.random.split(key, 12)
    H = hidden_shape

    def u(k, shape, scale):
        return jax.random.uniform(k, shape, jnp.float32, -scale, scale)

    s_lstm = 1.0 / np.sqrt(H)
    w_ih = u(ks[0], (4 * H, input_shape), s_lstm)   # PyTorch: weight_ih_l0
    w_hh = u(ks[1], (4 * H, H), s_lstm)             # PyTorch: weight_hh_l0
    b_ih = u(ks[2], (4 * H,), s_lstm)
    b_hh = u(ks[3], (4 * H,), s_lstm)

    def linear(kw, kb, fan_in, fan_out):
        s = 1.0 / np.sqrt(fan_in)
        w = u(kw, (fan_out, fan_in), s)             # PyTorch Linear weight layout
        b = u(kb, (fan_out,), s)
        return w, b

    w1, b1 = linear(ks[4], ks[5], H, 128)
    w2, b2 = linear(ks[6], ks[7], 128, 64)
    w3, b3 = linear(ks[8], ks[9], 64, 32)
    w4, b4 = linear(ks[10], ks[11], 32, output_shape)

    # Gate order is (i, f, g, o).  Fold the 0.5 pre-scale of the sigmoid gates
    # (i, f, o) into the kernel-side weights/bias so sigmoid(z) can be computed
    # as 0.5*(1 + tanh(z/2)) with a single tanh per step.  Power-of-two scaling
    # is exact in f32.
    gate_scale = np.ones((4 * H,), np.float32)
    gate_scale[0:2 * H] = 0.5     # i, f
    gate_scale[3 * H:4 * H] = 0.5  # o
    gate_scale = jnp.asarray(gate_scale)

    wih_t = w_ih.T                                   # (D, 4H)
    whh_t = w_hh.T                                   # (H, 4H)
    b_gates = (b_ih + b_hh).reshape(1, 4 * H)        # (1, 4H)

    return {
        # unscaled "math" parameters (used by the pure-JAX reference)
        "wih_t": wih_t,
        "whh_t": whh_t,
        "b_gates": b_gates,
        # kernel-side parameters with the 0.5 sigmoid pre-scale folded in
        "wih_s": wih_t * gate_scale[None, :],
        "whh_s": whh_t * gate_scale[None, :],
        "bg_s": b_gates * gate_scale[None, :],
        # MLP head
        "w1_t": w1.T, "b1": b1.reshape(1, -1),
        "w2_t": w2.T, "b2": b2.reshape(1, -1),
        "w3_t": w3.T, "b3": b3.reshape(1, -1),
        "w4_t": w4.T, "b4": b4.reshape(1, -1),
    }


def reference_forward(x_btd, params):
    """Pure-JAX reference for validation (same math as PyTorch LSTM + MLP head)."""
    B, T, D = x_btd.shape
    H = params["whh_t"].shape[0]

    def step(carry, x_t):
        h, c = carry
        gates = x_t @ params["wih_t"] + h @ params["whh_t"] + params["b_gates"]
        i = jax.nn.sigmoid(gates[:, 0 * H:1 * H])
        f = jax.nn.sigmoid(gates[:, 1 * H:2 * H])
        g = jnp.tanh(gates[:, 2 * H:3 * H])
        o = jax.nn.sigmoid(gates[:, 3 * H:4 * H])
        c = f * c + i * g
        h = o * jnp.tanh(c)
        return (h, c), None

    h0 = jnp.zeros((B, H), jnp.float32)
    (h, _), _ = lax.scan(step, (h0, h0), jnp.transpose(x_btd, (1, 0, 2)))
    y = jnp.maximum(h @ params["w1_t"] + params["b1"], 0.0)
    y = jnp.maximum(y @ params["w2_t"] + params["b2"], 0.0)
    y = jnp.maximum(y @ params["w3_t"] + params["b3"], 0.0)
    return y @ params["w4_t"] + params["b4"]


if __name__ == "__main__":
    B, T = 2, 8
    input_shape, hidden_shape, output_shape = 16, 32, 10

    key = jax.random.PRNGKey(0)
    k_x, k_p = jax.random.split(key)
    x = jax.random.normal(k_x, (B, T, input_shape), jnp.float32)
    params = init_params(k_p, input_shape, hidden_shape, output_shape)

    out = landmark_lstm_forward(x, params)
    out = jax.block_until_ready(out)

    ref = reference_forward(x, params)
    np.testing.assert_allclose(np.asarray(out), np.asarray(ref), rtol=1e-5, atol=1e-5)

    print("KERNEL_OK")
</pallas_src>

<mosaic_0001>
module attributes {stable_mosaic.version = 11 : i64} {
  func.func @_lstm_mlp_kernel(%arg0: memref<16x16xf32, #tpu.memory_space<vmem>>, %arg1: memref<16x128xf32, #tpu.memory_space<vmem>>, %arg2: memref<32x128xf32, #tpu.memory_space<vmem>>, %arg3: memref<1x128xf32, #tpu.memory_space<vmem>>, %arg4: memref<32x128xf32, #tpu.memory_space<vmem>>, %arg5: memref<1x128xf32, #tpu.memory_space<vmem>>, %arg6: memref<128x64xf32, #tpu.memory_space<vmem>>, %arg7: memref<1x64xf32, #tpu.memory_space<vmem>>, %arg8: memref<64x32xf32, #tpu.memory_space<vmem>>, %arg9: memref<1x32xf32, #tpu.memory_space<vmem>>, %arg10: memref<32x10xf32, #tpu.memory_space<vmem>>, %arg11: memref<1x10xf32, #tpu.memory_space<vmem>>, %arg12: memref<2x10xf32, #tpu.memory_space<vmem>>) attributes {dimension_semantics = [], scalar_prefetch = 0 : i64, scratch_operands = 0 : i64, tpu.core_type = #tpu.core_type<tc>} {
    %c0 = arith.constant 0 : index
    %c0_0 = arith.constant 0 : index
    %0 = vector.load %arg0[%c0, %c0_0] : memref<16x16xf32, #tpu.memory_space<vmem>>, vector<16x16xf32>
    %c0_1 = arith.constant 0 : index
    %c0_2 = arith.constant 0 : index
    %1 = vector.load %arg1[%c0_1, %c0_2] : memref<16x128xf32, #tpu.memory_space<vmem>>, vector<16x128xf32>
    %cst = arith.constant dense<0.000000e+00> : vector<16x128xf32>
    %2 = tpu.matmul %0, %1, %cst {dimension_numbers = #tpu.dot_dimension_numbers<[1], [0], [0], [1], [0, 0, 1, 1], [], []>} : vector<16x16xf32>, vector<16x128xf32>, vector<16x128xf32> -> vector<16x128xf32>
    %c0_3 = arith.constant 0 : index
    %c0_4 = arith.constant 0 : index
    %3 = vector.load %arg3[%c0_3, %c0_4] : memref<1x128xf32, #tpu.memory_space<vmem>>, vector<1x128xf32>
    %4 = vector.broadcast %3 : vector<1x128xf32> to vector<16x128xf32>
    %5 = arith.addf %2, %4 : vector<16x128xf32>
    %c0_5 = arith.constant 0 : index
    %c0_6 = arith.constant 0 : index
    %6 = vector.load %arg2[%c0_5, %c0_6] : memref<32x128xf32, #tpu.memory_space<vmem>>, vector<32x128xf32>
    %7 = tpu.iota {dimensions = array<i32: 1>} : vector<2x128xi32>
    %c64_i32 = arith.constant 64 : i32
    %8 = vector.broadcast %c64_i32 : i32 to vector<2x128xi32>
    %9 = arith.cmpi sge, %7, %8 : vector<2x128xi32>
    %c96_i32 = arith.constant 96 : i32
    %10 = vector.broadcast %c96_i32 : i32 to vector<2x128xi32>
    %11 = arith.cmpi slt, %7, %10 : vector<2x128xi32>
    %12 = arith.andi %9, %11 : vector<2x128xi1>
    %cst_7 = arith.constant 0.000000e+00 : f32
    %13 = vector.broadcast %cst_7 : f32 to vector<2x32xf32>
    %cst_8 = arith.constant 0.000000e+00 : f32
    %14 = vector.broadcast %cst_8 : f32 to vector<2x32xf32>
    %15 = vector.extract_strided_slice %5 {offsets = [0, 0], sizes = [2, 128], strides = [1, 1]} : vector<16x128xf32> to vector<2x128xf32>
    %cst_9 = arith.constant dense<0.000000e+00> : vector<2x128xf32>
    %16 = tpu.matmul %13, %6, %cst_9 {dimension_numbers = #tpu.dot_dimension_numbers<[1], [0], [0], [1], [0, 0, 1, 1], [], []>} : vector<2x32xf32>, vector<32x128xf32>, vector<2x128xf32> -> vector<2x128xf32>
    %17 = arith.addf %15, %16 : vector<2x128xf32>
    %18 = math.tanh %17 : vector<2x128xf32>
    %cst_10 = arith.constant 1.000000e+00 : f32
    %19 = vector.broadcast %cst_10 : f32 to vector<2x128xf32>
    %20 = arith.addf %18, %19 : vector<2x128xf32>
    %cst_11 = arith.constant 5.000000e-01 : f32
    %21 = vector.broadcast %cst_11 : f32 to vector<2x128xf32>
    %22 = arith.mulf %21, %20 : vector<2x128xf32>
    %23 = arith.select %12, %18, %22 : vector<2x128xi1>, vector<2x128xf32>
    %24 = vector.extract_strided_slice %23 {offsets = [0, 0], sizes = [2, 32], strides = [1, 1]} : vector<2x128xf32> to vector<2x32xf32>
    %25 = vector.extract_strided_slice %23 {offsets = [0, 32], sizes = [2, 32], strides = [1, 1]} : vector<2x128xf32> to vector<2x32xf32>
    %26 = vector.extract_strided_slice %23 {offsets = [0, 64], sizes = [2, 32], strides = [1, 1]} : vector<2x128xf32> to vector<2x32xf32>
    %27 = vector.extract_strided_slice %23 {offsets = [0, 96], sizes = [2, 32], strides = [1, 1]} : vector<2x128xf32> to vector<2x32xf32>
    %28 = arith.mulf %25, %14 : vector<2x32xf32>
    %29 = arith.mulf %24, %26 : vector<2x32xf32>
    %30 = arith.addf %28, %29 : vector<2x32xf32>
    %31 = math.tanh %30 : vector<2x32xf32>
    %32 = arith.mulf %27, %31 : vector<2x32xf32>
    %33 = vector.extract_strided_slice %5 {offsets = [2, 0], sizes = [2, 128], strides = [1, 1]} : vector<16x128xf32> to vector<2x128xf32>
    %cst_12 = arith.constant dense<0.000000e+00> : vector<2x128xf32>
    %34 = tpu.matmul %32, %6, %cst_12 {dimension_numbers = #tpu.dot_dimension_numbers<[1], [0], [0], [1], [0, 0, 1, 1], [], []>} : vector<2x32xf32>, vector<32x128xf32>, vector<2x128xf32> -> vector<2x128xf32>
    %35 = arith.addf %33, %34 : vector<2x128xf32>
    %36 = math.tanh %35 : vector<2x128xf32>
    %cst_13 = arith.constant 1.000000e+00 : f32
    %37 = vector.broadcast %cst_13 : f32 to vector<2x128xf32>
    %38 = arith.addf %36, %37 : vector<2x128xf32>
    %cst_14 = arith.constant 5.000000e-01 : f32
    %39 = vector.broadcast %cst_14 : f32 to vector<2x128xf32>
    %40 = arith.mulf %39, %38 : vector<2x128xf32>
    %41 = arith.select %12, %36, %40 : vector<2x128xi1>, vector<2x128xf32>
    %42 = vector.extract_strided_slice %41 {offsets = [0, 0], sizes = [2, 32], strides = [1, 1]} : vector<2x128xf32> to vector<2x32xf32>
    %43 = vector.extract_strided_slice %41 {offsets = [0, 32], sizes = [2, 32], strides = [1, 1]} : vector<2x128xf32> to vector<2x32xf32>
    %44 = vector.extract_strided_slice %41 {offsets = [0, 64], sizes = [2, 32], strides = [1, 1]} : vector<2x128xf32> to vector<2x32xf32>
    %45 = vector.extract_strided_slice %41 {offsets = [0, 96], sizes = [2, 32], strides = [1, 1]} : vector<2x128xf32> to vector<2x32xf32>
    %46 = arith.mulf %43, %30 : vector<2x32xf32>
    %47 = arith.mulf %42, %44 : vector<2x32xf32>
    %48 = arith.addf %46, %47 : vector<2x32xf32>
    %49 = math.tanh %48 : vector<2x32xf32>
    %50 = arith.mulf %45, %49 : vector<2x32xf32>
    %51 = vector.extract_strided_slice %5 {offsets = [4, 0], sizes = [2, 128], strides = [1, 1]} : vector<16x128xf32> to vector<2x128xf32>
    %cst_15 = arith.constant dense<0.000000e+00> : vector<2x128xf32>
    %52 = tpu.matmul %50, %6, %cst_15 {dimension_numbers = #tpu.dot_dimension_numbers<[1], [0], [0], [1], [0, 0, 1, 1], [], []>} : vector<2x32xf32>, vector<32x128xf32>, vector<2x128xf32> -> vector<2x128xf32>
    %53 = arith.addf %51, %52 : vector<2x128xf32>
    %54 = math.tanh %53 : vector<2x128xf32>
    %cst_16 = arith.constant 1.000000e+00 : f32
    %55 = vector.broadcast %cst_16 : f32 to vector<2x128xf32>
    %56 = arith.addf %54, %55 : vector<2x128xf32>
    %cst_17 = arith.constant 5.000000e-01 : f32
    %57 = vector.broadcast %cst_17 : f32 to vector<2x128xf32>
    %58 = arith.mulf %57, %56 : vector<2x128xf32>
    %59 = arith.select %12, %54, %58 : vector<2x128xi1>, vector<2x128xf32>
    %60 = vector.extract_strided_slice %59 {offsets = [0, 0], sizes = [2, 32], strides = [1, 1]} : vector<2x128xf32> to vector<2x32xf32>
    %61 = vector.extract_strided_slice %59 {offsets = [0, 32], sizes = [2, 32], strides = [1, 1]} : vector<2x128xf32> to vector<2x32xf32>
    %62 = vector.extract_strided_slice %59 {offsets = [0, 64], sizes = [2, 32], strides = [1, 1]} : vector<2x128xf32> to vector<2x32xf32>
    %63 = vector.extract_strided_slice %59 {offsets = [0, 96], sizes = [2, 32], strides = [1, 1]} : vector<2x128xf32> to vector<2x32xf32>
    %64 = arith.mulf %61, %48 : vector<2x32xf32>
    %65 = arith.mulf %60, %62 : vector<2x32xf32>
    %66 = arith.addf %64, %65 : vector<2x32xf32>
    %67 = math.tanh %66 : vector<2x32xf32>
    %68 = arith.mulf %63, %67 : vector<2x32xf32>
    %69 = vector.extract_strided_slice %5 {offsets = [6, 0], sizes = [2, 128], strides = [1, 1]} : vector<16x128xf32> to vector<2x128xf32>
    %cst_18 = arith.constant dense<0.000000e+00> : vector<2x128xf32>
    %70 = tpu.matmul %68, %6, %cst_18 {dimension_numbers = #tpu.dot_dimension_numbers<[1], [0], [0], [1], [0, 0, 1, 1], [], []>} : vector<2x32xf32>, vector<32x128xf32>, vector<2x128xf32> -> vector<2x128xf32>
    %71 = arith.addf %69, %70 : vector<2x128xf32>
    %72 = math.tanh %71 : vector<2x128xf32>
    %cst_19 = arith.constant 1.000000e+00 : f32
    %73 = vector.broadcast %cst_19 : f32 to vector<2x128xf32>
    %74 = arith.addf %72, %73 : vector<2x128xf32>
    %cst_20 = arith.constant 5.000000e-01 : f32
    %75 = vector.broadcast %cst_20 : f32 to vector<2x128xf32>
    %76 = arith.mulf %75, %74 : vector<2x128xf32>
    %77 = arith.select %12, %72, %76 : vector<2x128xi1>, vector<2x128xf32>
    %78 = vector.extract_strided_slice %77 {offsets = [0, 0], sizes = [2, 32], strides = [1, 1]} : vector<2x128xf32> to vector<2x32xf32>
    %79 = vector.extract_strided_slice %77 {offsets = [0, 32], sizes = [2, 32], strides = [1, 1]} : vector<2x128xf32> to vector<2x32xf32>
    %80 = vector.extract_strided_slice %77 {offsets = [0, 64], sizes = [2, 32], strides = [1, 1]} : vector<2x128xf32> to vector<2x32xf32>
    %81 = vector.extract_strided_slice %77 {offsets = [0, 96], sizes = [2, 32], strides = [1, 1]} : vector<2x128xf32> to vector<2x32xf32>
    %82 = arith.mulf %79, %66 : vector<2x32xf32>
    %83 = arith.mulf %78, %80 : vector<2x32xf32>
    %84 = arith.addf %82, %83 : vector<2x32xf32>
    %85 = math.tanh %84 : vector<2x32xf32>
    %86 = arith.mulf %81, %85 : vector<2x32xf32>
    %87 = vector.extract_strided_slice %5 {offsets = [8, 0], sizes = [2, 128], strides = [1, 1]} : vector<16x128xf32> to vector<2x128xf32>
    %cst_21 = arith.constant dense<0.000000e+00> : vector<2x128xf32>
    %88 = tpu.matmul %86, %6, %cst_21 {dimension_numbers = #tpu.dot_dimension_numbers<[1], [0], [0], [1], [0, 0, 1, 1], [], []>} : vector<2x32xf32>, vector<32x128xf32>, vector<2x128xf32> -> vector<2x128xf32>
    %89 = arith.addf %87, %88 : vector<2x128xf32>
    %90 = math.tanh %89 : vector<2x128xf32>
    %cst_22 = arith.constant 1.000000e+00 : f32
    %91 = vector.broadcast %cst_22 : f32 to vector<2x128xf32>
    %92 = arith.addf %90, %91 : vector<2x128xf32>
    %cst_23 = arith.constant 5.000000e-01 : f32
    %93 = vector.broadcast %cst_23 : f32 to vector<2x128xf32>
    %94 = arith.mulf %93, %92 : vector<2x128xf32>
    %95 = arith.select %12, %90, %94 : vector<2x128xi1>, vector<2x128xf32>
    %96 = vector.extract_strided_slice %95 {offsets = [0, 0], sizes = [2, 32], strides = [1, 1]} : vector<2x128xf32> to vector<2x32xf32>
    %97 = vector.extract_strided_slice %95 {offsets = [0, 32], sizes = [2, 32], strides = [1, 1]} : vector<2x128xf32> to vector<2x32xf32>
    %98 = vector.extract_strided_slice %95 {offsets = [0, 64], sizes = [2, 32], strides = [1, 1]} : vector<2x128xf32> to vector<2x32xf32>
    %99 = vector.extract_strided_slice %95 {offsets = [0, 96], sizes = [2, 32], strides = [1, 1]} : vector<2x128xf32> to vector<2x32xf32>
    %100 = arith.mulf %97, %84 : vector<2x32xf32>
    %101 = arith.mulf %96, %98 : vector<2x32xf32>
    %102 = arith.addf %100, %101 : vector<2x32xf32>
    %103 = math.tanh %102 : vector<2x32xf32>
    %104 = arith.mulf %99, %103 : vector<2x32xf32>
    %105 = vector.extract_strided_slice %5 {offsets = [10, 0], sizes = [2, 128], strides = [1, 1]} : vector<16x128xf32> to vector<2x128xf32>
    %cst_24 = arith.constant dense<0.000000e+00> : vector<2x128xf32>
    %106 = tpu.matmul %104, %6, %cst_24 {dimension_numbers = #tpu.dot_dimension_numbers<[1], [0], [0], [1], [0, 0, 1, 1], [], []>} : vector<2x32xf32>, vector<32x128xf32>, vector<2x128xf32> -> vector<2x128xf32>
    %107 = arith.addf %105, %106 : vector<2x128xf32>
    %108 = math.tanh %107 : vector<2x128xf32>
    %cst_25 = arith.constant 1.000000e+00 : f32
    %109 = vector.broadcast %cst_25 : f32 to vector<2x128xf32>
    %110 = arith.addf %108, %109 : vector<2x128xf32>
    %cst_26 = arith.constant 5.000000e-01 : f32
    %111 = vector.broadcast %cst_26 : f32 to vector<2x128xf32>
    %112 = arith.mulf %111, %110 : vector<2x128xf32>
    %113 = arith.select %12, %108, %112 : vector<2x128xi1>, vector<2x128xf32>
    %114 = vector.extract_strided_slice %113 {offsets = [0, 0], sizes = [2, 32], strides = [1, 1]} : vector<2x128xf32> to vector<2x32xf32>
    %115 = vector.extract_strided_slice %113 {offsets = [0, 32], sizes = [2, 32], strides = [1, 1]} : vector<2x128xf32> to vector<2x32xf32>
    %116 = vector.extract_strided_slice %113 {offsets = [0, 64], sizes = [2, 32], strides = [1, 1]} : vector<2x128xf32> to vector<2x32xf32>
    %117 = vector.extract_strided_slice %113 {offsets = [0, 96], sizes = [2, 32], strides = [1, 1]} : vector<2x128xf32> to vector<2x32xf32>
    %118 = arith.mulf %115, %102 : vector<2x32xf32>
    %119 = arith.mulf %114, %116 : vector<2x32xf32>
    %120 = arith.addf %118, %119 : vector<2x32xf32>
    %121 = math.tanh %120 : vector<2x32xf32>
    %122 = arith.mulf %117, %121 : vector<2x32xf32>
    %123 = vector.extract_strided_slice %5 {offsets = [12, 0], sizes = [2, 128], strides = [1, 1]} : vector<16x128xf32> to vector<2x128xf32>
    %cst_27 = arith.constant dense<0.000000e+00> : vector<2x128xf32>
    %124 = tpu.matmul %122, %6, %cst_27 {dimension_numbers = #tpu.dot_dimension_numbers<[1], [0], [0], [1], [0, 0, 1, 1], [], []>} : vector<2x32xf32>, vector<32x128xf32>, vector<2x128xf32> -> vector<2x128xf32>
    %125 = arith.addf %123, %124 : vector<2x128xf32>
    %126 = math.tanh %125 : vector<2x128xf32>
    %cst_28 = arith.constant 1.000000e+00 : f32
    %127 = vector.broadcast %cst_28 : f32 to vector<2x128xf32>
    %128 = arith.addf %126, %127 : vector<2x128xf32>
    %cst_29 = arith.constant 5.000000e-01 : f32
    %129 = vector.broadcast %cst_29 : f32 to vector<2x128xf32>
    %130 = arith.mulf %129, %128 : vector<2x128xf32>
    %131 = arith.select %12, %126, %130 : vector<2x128xi1>, vector<2x128xf32>
    %132 = vector.extract_strided_slice %131 {offsets = [0, 0], sizes = [2, 32], strides = [1, 1]} : vector<2x128xf32> to vector<2x32xf32>
    %133 = vector.extract_strided_slice %131 {offsets = [0, 32], sizes = [2, 32], strides = [1, 1]} : vector<2x128xf32> to vector<2x32xf32>
    %134 = vector.extract_strided_slice %131 {offsets = [0, 64], sizes = [2, 32], strides = [1, 1]} : vector<2x128xf32> to vector<2x32xf32>
    %135 = vector.extract_strided_slice %131 {offsets = [0, 96], sizes = [2, 32], strides = [1, 1]} : vector<2x128xf32> to vector<2x32xf32>
    %136 = arith.mulf %133, %120 : vector<2x32xf32>
    %137 = arith.mulf %132, %134 : vector<2x32xf32>
    %138 = arith.addf %136, %137 : vector<2x32xf32>
    %139 = math.tanh %138 : vector<2x32xf32>
    %140 = arith.mulf %135, %139 : vector<2x32xf32>
    %141 = vector.extract_strided_slice %5 {offsets = [14, 0], sizes = [2, 128], strides = [1, 1]} : vector<16x128xf32> to vector<2x128xf32>
    %cst_30 = arith.constant dense<0.000000e+00> : vector<2x128xf32>
    %142 = tpu.matmul %140, %6, %cst_30 {dimension_numbers = #tpu.dot_dimension_numbers<[1], [0], [0], [1], [0, 0, 1, 1], [], []>} : vector<2x32xf32>, vector<32x128xf32>, vector<2x128xf32> -> vector<2x128xf32>
    %143 = arith.addf %141, %142 : vector<2x128xf32>
    %144 = math.tanh %143 : vector<2x128xf32>
    %cst_31 = arith.constant 1.000000e+00 : f32
    %145 = vector.broadcast %cst_31 : f32 to vector<2x128xf32>
    %146 = arith.addf %144, %145 : vector<2x128xf32>
    %cst_32 = arith.constant 5.000000e-01 : f32
    %147 = vector.broadcast %cst_32 : f32 to vector<2x128xf32>
    %148 = arith.mulf %147, %146 : vector<2x128xf32>
    %149 = arith.select %12, %144, %148 : vector<2x128xi1>, vector<2x128xf32>
    %150 = vector.extract_strided_slice %149 {offsets = [0, 0], sizes = [2, 32], strides = [1, 1]} : vector<2x128xf32> to vector<2x32xf32>
    %151 = vector.extract_strided_slice %149 {offsets = [0, 32], sizes = [2, 32], strides = [1, 1]} : vector<2x128xf32> to vector<2x32xf32>
    %152 = vector.extract_strided_slice %149 {offsets = [0, 64], sizes = [2, 32], strides = [1, 1]} : vector<2x128xf32> to vector<2x32xf32>
    %153 = vector.extract_strided_slice %149 {offsets = [0, 96], sizes = [2, 32], strides = [1, 1]} : vector<2x128xf32> to vector<2x32xf32>
    %154 = arith.mulf %151, %138 : vector<2x32xf32>
    %155 = arith.mulf %150, %152 : vector<2x32xf32>
    %156 = arith.addf %154, %155 : vector<2x32xf32>
    %157 = math.tanh %156 : vector<2x32xf32>
    %158 = arith.mulf %153, %157 : vector<2x32xf32>
    %c0_33 = arith.constant 0 : index
    %c0_34 = arith.constant 0 : index
    %159 = vector.load %arg4[%c0_33, %c0_34] : memref<32x128xf32, #tpu.memory_space<vmem>>, vector<32x128xf32>
    %cst_35 = arith.constant dense<0.000000e+00> : vector<2x128xf32>
    %160 = tpu.matmul %158, %159, %cst_35 {dimension_numbers = #tpu.dot_dimension_numbers<[1], [0], [0], [1], [0, 0, 1, 1], [], []>} : vector<2x32xf32>, vector<32x128xf32>, vector<2x128xf32> -> vector<2x128xf32>
    %c0_36 = arith.constant 0 : index
    %c0_37 = arith.constant 0 : index
    %161 = vector.load %arg5[%c0_36, %c0_37] : memref<1x128xf32, #tpu.memory_space<vmem>>, vector<1x128xf32>
    %162 = vector.broadcast %161 : vector<1x128xf32> to vector<2x128xf32>
    %163 = arith.addf %160, %162 : vector<2x128xf32>
    %cst_38 = arith.constant 0.000000e+00 : f32
    %164 = vector.broadcast %cst_38 : f32 to vector<2x128xf32>
    %165 = arith.maximumf %163, %164 : vector<2x128xf32>
    %c0_39 = arith.constant 0 : index
    %c0_40 = arith.constant 0 : index
    %166 = vector.load %arg6[%c0_39, %c0_40] : memref<128x64xf32, #tpu.memory_space<vmem>>, vector<128x64xf32>
    %cst_41 = arith.constant dense<0.000000e+00> : vector<2x64xf32>
    %167 = tpu.matmul %165, %166, %cst_41 {dimension_numbers = #tpu.dot_dimension_numbers<[1], [0], [0], [1], [0, 0, 1, 1], [], []>} : vector<2x128xf32>, vector<128x64xf32>, vector<2x64xf32> -> vector<2x64xf32>
    %c0_42 = arith.constant 0 : index
    %c0_43 = arith.constant 0 : index
    %168 = vector.load %arg7[%c0_42, %c0_43] : memref<1x64xf32, #tpu.memory_space<vmem>>, vector<1x64xf32>
    %169 = vector.broadcast %168 : vector<1x64xf32> to vector<2x64xf32>
    %170 = arith.addf %167, %169 : vector<2x64xf32>
    %cst_44 = arith.constant 0.000000e+00 : f32
    %171 = vector.broadcast %cst_44 : f32 to vector<2x64xf32>
    %172 = arith.maximumf %170, %171 : vector<2x64xf32>
    %c0_45 = arith.constant 0 : index
    %c0_46 = arith.constant 0 : index
    %173 = vector.load %arg8[%c0_45, %c0_46] : memref<64x32xf32, #tpu.memory_space<vmem>>, vector<64x32xf32>
    %cst_47 = arith.constant dense<0.000000e+00> : vector<2x32xf32>
    %174 = tpu.matmul %172, %173, %cst_47 {dimension_numbers = #tpu.dot_dimension_numbers<[1], [0], [0], [1], [0, 0, 1, 1], [], []>} : vector<2x64xf32>, vector<64x32xf32>, vector<2x32xf32> -> vector<2x32xf32>
    %c0_48 = arith.constant 0 : index
    %c0_49 = arith.constant 0 : index
    %175 = vector.load %arg9[%c0_48, %c0_49] : memref<1x32xf32, #tpu.memory_space<vmem>>, vector<1x32xf32>
    %176 = vector.broadcast %175 : vector<1x32xf32> to vector<2x32xf32>
    %177 = arith.addf %174, %176 : vector<2x32xf32>
    %cst_50 = arith.constant 0.000000e+00 : f32
    %178 = vector.broadcast %cst_50 : f32 to vector<2x32xf32>
    %179 = arith.maximumf %177, %178 : vector<2x32xf32>
    %c0_51 = arith.constant 0 : index
    %c0_52 = arith.constant 0 : index
    %180 = vector.load %arg10[%c0_51, %c0_52] : memref<32x10xf32, #tpu.memory_space<vmem>>, vector<32x10xf32>
    %cst_53 = arith.constant dense<0.000000e+00> : vector<2x10xf32>
    %181 = tpu.matmul %179, %180, %cst_53 {dimension_numbers = #tpu.dot_dimension_numbers<[1], [0], [0], [1], [0, 0, 1, 1], [], []>} : vector<2x32xf32>, vector<32x10xf32>, vector<2x10xf32> -> vector<2x10xf32>
    %c0_54 = arith.constant 0 : index
    %c0_55 = arith.constant 0 : index
    %182 = vector.load %arg11[%c0_54, %c0_55] : memref<1x10xf32, #tpu.memory_space<vmem>>, vector<1x10xf32>
    %183 = vector.broadcast %182 : vector<1x10xf32> to vector<2x10xf32>
    %184 = arith.addf %181, %183 : vector<2x10xf32>
    %c0_56 = arith.constant 0 : index
    %c0_57 = arith.constant 0 : index
    %185 = vector.load %arg12[%c0_56, %c0_57] : memref<2x10xf32, #tpu.memory_space<vmem>>, vector<2x10xf32>
    tpu.vector_store %arg12[%c0_56, %c0_57], %184 {strides = array<i32>} : memref<2x10xf32, #tpu.memory_space<vmem>>, vector<2x10xf32>,
    return
  }
}

</mosaic_0001>

<llo_original>
// kernel: tpu_custom_call.1
$region0: #{tpu_custom_call.1}
  #allocation0 [shape = 'u32[]', space=smem, size = 0x4, offset = 0x4, fixed_abs, tag = 'smem constant byte address 0x4 - core index']
  #allocation1 [shape = 'u32[144,128]{1,0:T(1,128)}', space=vmem, size = 0x12000, scoped, tag = 'internal scratch']
  %s0 = inlined_call_operand.vmem [shape: f32[16,16], index: 0, kind: input, shape index: {}]
  %s1 = inlined_call_operand.vmem [shape: f32[16,128], index: 1, kind: input, shape index: {}]
  %s2 = inlined_call_operand.vmem [shape: f32[32,128], index: 2, kind: input, shape index: {}]
  %s3 = inlined_call_operand.vmem [shape: f32[1,128], index: 3, kind: input, shape index: {}]
  %s4 = inlined_call_operand.vmem [shape: f32[32,128], index: 4, kind: input, shape index: {}]
  %s5 = inlined_call_operand.vmem [shape: f32[1,128], index: 5, kind: input, shape index: {}]
  %s6 = inlined_call_operand.vmem [shape: f32[128,64], index: 6, kind: input, shape index: {}]
  %s7 = inlined_call_operand.vmem [shape: f32[1,64], index: 7, kind: input, shape index: {}]
  %s8 = inlined_call_operand.vmem [shape: f32[64,32], index: 8, kind: input, shape index: {}]
  %s9 = inlined_call_operand.vmem [shape: f32[1,32], index: 9, kind: input, shape index: {}]
  %s10 = inlined_call_operand.vmem [shape: f32[32,10], index: 10, kind: input, shape index: {}]
  %s11 = inlined_call_operand.vmem [shape: f32[1,10], index: 11, kind: input, shape index: {}]
  %s12 = inlined_call_operand.hbm [shape: f32[2,10], index: 12, kind: output, shape index: {}]
  %s13 = sld [smem:[#allocation0]]
  $region58: #{tpu_custom_call.1} parent=0
    _
  %s15 = ssub.s32 1, %s13
  %s16 = scalar_select 0, %s15, %s13
  $region1: #{tpu_custom_call.1} parent=0
    #allocation2 [shape = 'u8[1024]{0}', space=vmem, size = 0x400, scoped, tag = 'output window, operand 0, single buffered']
    #allocation3 [shape = 's32[1]{0}', space=sflag, size = 0x4, scoped, tag = 'scoped memory for tpu_custom_call.1']
    %17 = vsyncpa [#allocation3], 0
    // Predicated region
    $region2: #{tpu_custom_call.1} parent=1 // pred_check
      _
    $region3: #{tpu_custom_call.1} parent=1 // pred_check_branch
      %19 = sbr.rel (0) target = $region5
    $region4: #{tpu_custom_call.1} parent=1 // pred_region
      _
    $region5: #{tpu_custom_call.1} parent=1 // pred_fallthru
      _
    // Predicated region
    $region6: #{tpu_custom_call.1} parent=1 // pred_check
      _
    $region7: #{tpu_custom_call.1} parent=1 // pred_check_branch
      %21 = sbr.rel (0) target = $region9
    $region8: #{tpu_custom_call.1} parent=1 // pred_region
      _
    $region9: #{tpu_custom_call.1} parent=1 // pred_fallthru
      _
    // Predicated region
    $region10: #{tpu_custom_call.1} parent=1 // pred_check
      _
    $region11: #{tpu_custom_call.1} parent=1 // pred_check_branch
      %23 = sbr.rel (0) target = $region13
    $region12: #{tpu_custom_call.1} parent=1 // pred_region
      _
    $region13: #{tpu_custom_call.1} parent=1 // pred_fallthru
      _
    // Predicated region
    $region14: #{tpu_custom_call.1} parent=1 // pred_check
      _
    $region15: #{tpu_custom_call.1} parent=1 // pred_check_branch
      %25 = sbr.rel (0) target = $region17
    $region16: #{tpu_custom_call.1} parent=1 // pred_region
      _
    $region17: #{tpu_custom_call.1} parent=1 // pred_fallthru
      _
    // Predicated region
    $region18: #{tpu_custom_call.1} parent=1 // pred_check
      _
    $region19: #{tpu_custom_call.1} parent=1 // pred_check_branch
      %27 = sbr.rel (0) target = $region21
    $region20: #{tpu_custom_call.1} parent=1 // pred_region
      _
    $region21: #{tpu_custom_call.1} parent=1 // pred_fallthru
      _
    // Predicated region
    $region22: #{tpu_custom_call.1} parent=1 // pred_check
      _
    $region23: #{tpu_custom_call.1} parent=1 // pred_check_branch
      %29 = sbr.rel (0) target = $region25
    $region24: #{tpu_custom_call.1} parent=1 // pred_region
      _
    $region25: #{tpu_custom_call.1} parent=1 // pred_fallthru
      _
    // Predicated region
    $region26: #{tpu_custom_call.1} parent=1 // pred_check
      _
    $region27: #{tpu_custom_call.1} parent=1 // pred_check_branch
      %31 = sbr.rel (0) target = $region29
    $region28: #{tpu_custom_call.1} parent=1 // pred_region
      _
    $region29: #{tpu_custom_call.1} parent=1 // pred_fallthru
      _
    // Predicated region
    $region30: #{tpu_custom_call.1} parent=1 // pred_check
      _
    $region31: #{tpu_custom_call.1} parent=1 // pred_check_branch
      %33 = sbr.rel (0) target = $region33
    $region32: #{tpu_custom_call.1} parent=1 // pred_region
      _
    $region33: #{tpu_custom_call.1} parent=1 // pred_fallthru
      _
    // Predicated region
    $region34: #{tpu_custom_call.1} parent=1 // pred_check
      _
    $region35: #{tpu_custom_call.1} parent=1 // pred_check_branch
      %35 = sbr.rel (0) target = $region37
    $region36: #{tpu_custom_call.1} parent=1 // pred_region
      _
    $region37: #{tpu_custom_call.1} parent=1 // pred_fallthru
      _
    // Predicated region
    $region38: #{tpu_custom_call.1} parent=1 // pred_check
      _
    $region39: #{tpu_custom_call.1} parent=1 // pred_check_branch
      %37 = sbr.rel (0) target = $region41
    $region40: #{tpu_custom_call.1} parent=1 // pred_region
      _
    $region41: #{tpu_custom_call.1} parent=1 // pred_fallthru
      _
    // Predicated region
    $region42: #{tpu_custom_call.1} parent=1 // pred_check
      _
    $region43: #{tpu_custom_call.1} parent=1 // pred_check_branch
      %39 = sbr.rel (0) target = $region45
    $region44: #{tpu_custom_call.1} parent=1 // pred_region
      _
    $region45: #{tpu_custom_call.1} parent=1 // pred_fallthru
      _
    // Predicated region
    $region46: #{tpu_custom_call.1} parent=1 // pred_check
      _
    $region47: #{tpu_custom_call.1} parent=1 // pred_check_branch
      %41 = sbr.rel (0) target = $region49
    $region48: #{tpu_custom_call.1} parent=1 // pred_region
      _
    $region49: #{tpu_custom_call.1} parent=1 // pred_fallthru
      _
    %v42 = vld [vmem:[%s0] sm:$0xff]
    %v43 = vld [vmem:[%s0 + $0x8] sm:$0xff]
    %v44 = vld [vmem:[%s1] sm:$0xff]
    %v45 = vld [vmem:[%s1 + $0x8] sm:$0xff]
    %v46 = vld [vmem:[%s3] sm:$0x1]
    %v48 = vlaneseq
    %v49 = vshrl.u32 %v48, 7
    %v50 = vsub.s32 0, %v49
    %v51 = vrot.slane %v46, %v50
    %vm53 = vcmask 130048
    %v55 = vsel %vm53, %v42, 0
    %v58 = vsel %vm53, %v43, 0
    %60 = vmatprep.subr.mxu0 0.0
    %61 = vmatpush1.msra.mxu0 0.0
    %62 = vmatprep.subr.mxu0 0.0
    %63 = vmatpush1.msra.mxu0 0.0
    %64 = vmatprep.subr.mxu0 0.0
    %65 = vmatpush1.msra.mxu0 0.0
    %66 = vmatprep.subr.mxu0 0.0
    %67 = vmatpush1.msra.mxu0 0.0
    %68 = vmatprep.subr.mxu0 0.0
    %69 = vmatpush1.msra.mxu0 0.0
    %70 = vmatprep.subr.mxu0 0.0
    %71 = vmatpush1.msra.mxu0 0.0
    %72 = vmatprep.subr.mxu0 0.0
    %73 = vmatpush1.msra.mxu0 0.0
    %74 = vmatprep.subr.mxu0 0.0
    %75 = vmatpush1.msra.mxu0 0.0
    %76 = vmatprep.subr.mxu0 0.0
    %77 = vmatpush1.msra.mxu0 0.0
    %78 = vmatprep.subr.mxu0 0.0
    %79 = vmatpush1.msra.mxu0 0.0
    %80 = vmatprep.subr.mxu0 0.0
    %81 = vmatpush1.msra.mxu0 0.0
    %82 = vmatprep.subr.mxu0 0.0
    %83 = vmatpush1.msra.mxu0 0.0
    %84 = vmatprep.subr.mxu0 0.0
    %85 = vmatpush1.msra.mxu0 0.0
    %86 = vmatprep.subr.mxu0 0.0
    %87 = vmatpush1.msra.mxu0 0.0
    %88 = vmatprep.subr.mxu0 0.0
    %89 = vmatpush1.msra.mxu0 %v45
    %90 = vmatprep.subr.mxu0 0.0
    %91 = vmatpush1.msra.mxu0 %v44
    %92 = vmatprep.subr.mxu0 0.0
    %93 = vmatpush2.msra.mxu0 0.0
    %94 = vmatprep.subr.mxu0 0.0
    %95 = vmatpush2.msra.mxu0 0.0
    %96 = vmatprep.subr.mxu0 0.0
    %97 = vmatpush2.msra.mxu0 0.0
    %98 = vmatprep.subr.mxu0 0.0
    %99 = vmatpush2.msra.mxu0 0.0
    %100 = vmatprep.subr.mxu0 0.0
    %101 = vmatpush2.msra.mxu0 0.0
    %102 = vmatprep.subr.mxu0 0.0
    %103 = vmatpush2.msra.mxu0 0.0
    %104 = vmatprep.subr.mxu0 0.0
    %105 = vmatpush2.msra.mxu0 0.0
    %106 = vmatprep.subr.mxu0 0.0
    %107 = vmatpush2.msra.mxu0 0.0
    %108 = vmatprep.subr.mxu0 0.0
    %109 = vmatpush2.msra.mxu0 0.0
    %110 = vmatprep.subr.mxu0 0.0
    %111 = vmatpush2.msra.mxu0 0.0
    %112 = vmatprep.subr.mxu0 0.0
    %113 = vmatpush2.msra.mxu0 0.0
    %114 = vmatprep.subr.mxu0 0.0
    %115 = vmatpush2.msra.mxu0 0.0
    %116 = vmatprep.subr.mxu0 0.0
    %117 = vmatpush2.msra.mxu0 0.0
    %118 = vmatprep.subr.mxu0 0.0
    %119 = vmatpush2.msra.mxu0 0.0
    %120 = vmatprep.subr.mxu0 0.0
    %121 = vmatpush2.msra.mxu0 0.0
    %122 = vmatprep.subr.mxu0 0.0
    %123 = vmatpush2.msra.mxu0 0.0
    %124 = vmatprep.mubr.f32.mxu0 0.0
    %125 = vmatmul.mubr.f32.gmra.mxu0 %v55
    %v126 = vpop.f32.mrf.mxu0
    %v127 = vadd.f32 %v51, %v126
    %v128 = vpop.f32.mrf.mxu0
    %129 = vmatprep.mubr.f32.mxu0 0.0
    %130 = vmatmul.mubr.f32.gmra.mxu0 %v58
    %v131 = vpop.f32.mrf.mxu0
    %v132 = vadd.f32 %v51, %v131
    %v133 = vpop.f32.mrf.mxu0
    %134 = vdwg.mxu0
    %v135 = vld [vmem:[%s2] sm:$0xff]
    %v136 = vld [vmem:[%s2 + $0x8] sm:$0xff]
    %v137 = vld [vmem:[%s2 + $0x10] sm:$0xff]
    %v138 = vld [vmem:[%s2 + $0x18] sm:$0xff]
    %v139 = vlaneseq
    %v140 = vand.u32 %v139, 127
    %vm141 = vcmp.ge.s32.totalorder %v140, 64
    %vm142 = vcmp.lt.s32.totalorder %v140, 96
    %vm143 = vmand %vm141, %vm142
    %vm144 = vcmask 261120
    %v146 = vsel %vm144, 0.0, 0
    %148 = vmatprep.subr.mxu0 0.0
    %149 = vmatpush1.msra.mxu0 0.0
    %150 = vmatprep.subr.mxu0 0.0
    %151 = vmatpush1.msra.mxu0 0.0
    %152 = vmatprep.subr.mxu0 0.0
    %153 = vmatpush1.msra.mxu0 0.0
    %154 = vmatprep.subr.mxu0 0.0
    %155 = vmatpush1.msra.mxu0 0.0
    %156 = vmatprep.subr.mxu0 0.0
    %157 = vmatpush1.msra.mxu0 0.0
    %158 = vmatprep.subr.mxu0 0.0
    %159 = vmatpush1.msra.mxu0 0.0
    %160 = vmatprep.subr.mxu0 0.0
    %161 = vmatpush1.msra.mxu0 0.0
    %162 = vmatprep.subr.mxu0 0.0
    %163 = vmatpush1.msra.mxu0 0.0
    %164 = vmatprep.subr.mxu0 0.0
    %165 = vmatpush1.msra.mxu0 0.0
    %166 = vmatprep.subr.mxu0 0.0
    %167 = vmatpush1.msra.mxu0 0.0
    %168 = vmatprep.subr.mxu0 0.0
    %169 = vmatpush1.msra.mxu0 0.0
    %170 = vmatprep.subr.mxu0 0.0
    %171 = vmatpush1.msra.mxu0 0.0
    %172 = vmatprep.subr.mxu0 0.0
    %173 = vmatpush1.msra.mxu0 %v138
    %174 = vmatprep.subr.mxu0 0.0
    %175 = vmatpush1.msra.mxu0 %v137
    %176 = vmatprep.subr.mxu0 0.0
    %177 = vmatpush1.msra.mxu0 %v136
    %178 = vmatprep.subr.mxu0 0.0
    %179 = vmatpush1.msra.mxu0 %v135
    %180 = vmatprep.subr.mxu0 0.0
    %181 = vmatpush2.msra.mxu0 0.0
    %182 = vmatprep.subr.mxu0 0.0
    %183 = vmatpush2.msra.mxu0 0.0
    %184 = vmatprep.subr.mxu0 0.0
    %185 = vmatpush2.msra.mxu0 0.0
    %186 = vmatprep.subr.mxu0 0.0
    %187 = vmatpush2.msra.mxu0 0.0
    %188 = vmatprep.subr.mxu0 0.0
    %189 = vmatpush2.msra.mxu0 0.0
    %190 = vmatprep.subr.mxu0 0.0
    %191 = vmatpush2.msra.mxu0 0.0
    %192 = vmatprep.subr.mxu0 0.0
    %193 = vmatpush2.msra.mxu0 0.0
    %194 = vmatprep.subr.mxu0 0.0
    %195 = vmatpush2.msra.mxu0 0.0
    %196 = vmatprep.subr.mxu0 0.0
    %197 = vmatpush2.msra.mxu0 0.0
    %198 = vmatprep.subr.mxu0 0.0
    %199 = vmatpush2.msra.mxu0 0.0
    %200 = vmatprep.subr.mxu0 0.0
    %201 = vmatpush2.msra.mxu0 0.0
    %202 = vmatprep.subr.mxu0 0.0
    %203 = vmatpush2.msra.mxu0 0.0
    %204 = vmatprep.subr.mxu0 0.0
    %205 = vmatpush2.msra.mxu0 0.0
    %206 = vmatprep.subr.mxu0 0.0
    %207 = vmatpush2.msra.mxu0 0.0
    %208 = vmatprep.subr.mxu0 0.0
    %209 = vmatpush2.msra.mxu0 0.0
    %210 = vmatprep.subr.mxu0 0.0
    %211 = vmatpush2.msra.mxu0 0.0
    %212 = vmatprep.mubr.f32.mxu0 0.0
    %213 = vmatmul.mubr.f32.gmra.mxu0 %v146
    %v214 = vpop.f32.mrf.mxu0
    %v215 = vadd.f32 0.0, %v214
    %v216 = vpop.f32.mrf.mxu0
    %217 = vdwg.mxu0
    %v218 = vadd.f32 %v127, %v215
    %v219 = vtanh.pop %v218
    %v220 = vadd.f32 %v219, 1.0
    %v221 = vmul.f32 %v220, 0.5
    %v222 = vsel %vm143, %v219, %v221
    %v223 = vmul.f32 %v222, 0.0
    %225 = vrot.lane.b32.xlu0 %v222, 64
    %v226 = vpop.permute.xlu0 %225
    %v228 = vmul.f32 %v222, %v226
    %230 = vrot.lane.b32.xlu0 %v228, 32
    %v231 = vpop.permute.xlu0 %230
    %v233 = vadd.f32 %v223, %v231
    %v234 = vtanh.pop %v233
    %236 = vrot.lane.b32.xlu0 %v234, 64
    %v237 = vpop.permute.xlu0 %236
    %v239 = vmul.f32 %v222, %v237
    %241 = vrot.lane.b32.xlu0 %v239, 32
    %v242 = vpop.permute.xlu0 %241
    %v243 = vsel %vm144, %v242, 0
    %245 = vmatprep.subr.mxu0 0.0
    %246 = vmatpush1.msra.mxu0 0.0
    %247 = vmatprep.subr.mxu0 0.0
    %248 = vmatpush1.msra.mxu0 0.0
    %249 = vmatprep.subr.mxu0 0.0
    %250 = vmatpush1.msra.mxu0 0.0
    %251 = vmatprep.subr.mxu0 0.0
    %252 = vmatpush1.msra.mxu0 0.0
    %253 = vmatprep.subr.mxu0 0.0
    %254 = vmatpush1.msra.mxu0 0.0
    %255 = vmatprep.subr.mxu0 0.0
    %256 = vmatpush1.msra.mxu0 0.0
    %257 = vmatprep.subr.mxu0 0.0
    %258 = vmatpush1.msra.mxu0 0.0
    %259 = vmatprep.subr.mxu0 0.0
    %260 = vmatpush1.msra.mxu0 0.0
    %261 = vmatprep.subr.mxu0 0.0
    %262 = vmatpush1.msra.mxu0 0.0
    %263 = vmatprep.subr.mxu0 0.0
    %264 = vmatpush1.msra.mxu0 0.0
    %265 = vmatprep.subr.mxu0 0.0
    %266 = vmatpush1.msra.mxu0 0.0
    %267 = vmatprep.subr.mxu0 0.0
    %268 = vmatpush1.msra.mxu0 0.0
    %269 = vmatprep.subr.mxu0 0.0
    %270 = vmatpush1.msra.mxu0 %v138
    %271 = vmatprep.subr.mxu0 0.0
    %272 = vmatpush1.msra.mxu0 %v137
    %273 = vmatprep.subr.mxu0 0.0
    %274 = vmatpush1.msra.mxu0 %v136
    %275 = vmatprep.subr.mxu0 0.0
    %276 = vmatpush1.msra.mxu0 %v135
    %277 = vmatprep.subr.mxu0 0.0
    %278 = vmatpush2.msra.mxu0 0.0
    %279 = vmatprep.subr.mxu0 0.0
    %280 = vmatpush2.msra.mxu0 0.0
    %281 = vmatprep.subr.mxu0 0.0
    %282 = vmatpush2.msra.mxu0 0.0
    %283 = vmatprep.subr.mxu0 0.0
    %284 = vmatpush2.msra.mxu0 0.0
    %285 = vmatprep.subr.mxu0 0.0
    %286 = vmatpush2.msra.mxu0 0.0
    %287 = vmatprep.subr.mxu0 0.0
    %288 = vmatpush2.msra.mxu0 0.0
    %289 = vmatprep.subr.mxu0 0.0
    %290 = vmatpush2.msra.mxu0 0.0
    %291 = vmatprep.subr.mxu0 0.0
    %292 = vmatpush2.msra.mxu0 0.0
    %293 = vmatprep.subr.mxu0 0.0
    %294 = vmatpush2.msra.mxu0 0.0
    %295 = vmatprep.subr.mxu0 0.0
    %296 = vmatpush2.msra.mxu0 0.0
    %297 = vmatprep.subr.mxu0 0.0
    %298 = vmatpush2.msra.mxu0 0.0
    %299 = vmatprep.subr.mxu0 0.0
    %300 = vmatpush2.msra.mxu0 0.0
    %301 = vmatprep.subr.mxu0 0.0
    %302 = vmatpush2.msra.mxu0 0.0
    %303 = vmatprep.subr.mxu0 0.0
    %304 = vmatpush2.msra.mxu0 0.0
    %305 = vmatprep.subr.mxu0 0.0
    %306 = vmatpush2.msra.mxu0 0.0
    %307 = vmatprep.subr.mxu0 0.0
    %308 = vmatpush2.msra.mxu0 0.0
    %309 = vmatprep.mubr.f32.mxu0 0.0
    %310 = vmatmul.mubr.f32.gmra.mxu0 %v243
    %v311 = vpop.f32.mrf.mxu0
    %v312 = vadd.f32 0.0, %v311
    %v313 = vpop.f32.mrf.mxu0
    %314 = vdwg.mxu0
    %v316 = vrot.slane %v312, 6
    %v318 = vadd.f32 %v127, %v316
    %v319 = vtanh.pop %v318
    %v320 = vadd.f32 %v319, 1.0
    %v321 = vmul.f32 %v320, 0.5
    %v322 = vsel %vm143, %v319, %v321
    %v324 = vrot.slane %v233, 6
    %v326 = vmul.f32 %v322, %v324
    %328 = vrot.lane.b32.xlu0 %v322, 64
    %v329 = vpop.permute.xlu0 %328
    %v331 = vmul.f32 %v322, %v329
    %333 = vrot.lane.b32.xlu0 %v331, 32
    %v334 = vpop.permute.xlu0 %333
    %v336 = vadd.f32 %v326, %v334
    %v337 = vtanh.pop %v336
    %339 = vrot.lane.b32.xlu0 %v337, 64
    %v340 = vpop.permute.xlu0 %339
    %v342 = vmul.f32 %v322, %v340
    %v344 = vrot.slane %v342, 2
    %345 = vrot.lane.b32.xlu0 %v344, 32
    %v346 = vpop.permute.xlu0 %345
    %v347 = vsel %vm144, %v346, 0
    %349 = vmatprep.subr.mxu0 0.0
    %350 = vmatpush1.msra.mxu0 0.0
    %351 = vmatprep.subr.mxu0 0.0
    %352 = vmatpush1.msra.mxu0 0.0
    %353 = vmatprep.subr.mxu0 0.0
    %354 = vmatpush1.msra.mxu0 0.0
    %355 = vmatprep.subr.mxu0 0.0
    %356 = vmatpush1.msra.mxu0 0.0
    %357 = vmatprep.subr.mxu0 0.0
    %358 = vmatpush1.msra.mxu0 0.0
    %359 = vmatprep.subr.mxu0 0.0
    %360 = vmatpush1.msra.mxu0 0.0
    %361 = vmatprep.subr.mxu0 0.0
    %362 = vmatpush1.msra.mxu0 0.0
    %363 = vmatprep.subr.mxu0 0.0
    %364 = vmatpush1.msra.mxu0 0.0
    %365 = vmatprep.subr.mxu0 0.0
    %366 = vmatpush1.msra.mxu0 0.0
    %367 = vmatprep.subr.mxu0 0.0
    %368 = vmatpush1.msra.mxu0 0.0
    %369 = vmatprep.subr.mxu0 0.0
    %370 = vmatpush1.msra.mxu0 0.0
    %371 = vmatprep.subr.mxu0 0.0
    %372 = vmatpush1.msra.mxu0 0.0
    %373 = vmatprep.subr.mxu0 0.0
    %374 = vmatpush1.msra.mxu0 %v138
    %375 = vmatprep.subr.mxu0 0.0
    %376 = vmatpush1.msra.mxu0 %v137
    %377 = vmatprep.subr.mxu0 0.0
    %378 = vmatpush1.msra.mxu0 %v136
    %379 = vmatprep.subr.mxu0 0.0
    %380 = vmatpush1.msra.mxu0 %v135
    %381 = vmatprep.subr.mxu0 0.0
    %382 = vmatpush2.msra.mxu0 0.0
    %383 = vmatprep.subr.mxu0 0.0
    %384 = vmatpush2.msra.mxu0 0.0
    %385 = vmatprep.subr.mxu0 0.0
    %386 = vmatpush2.msra.mxu0 0.0
    %387 = vmatprep.subr.mxu0 0.0
    %388 = vmatpush2.msra.mxu0 0.0
    %389 = vmatprep.subr.mxu0 0.0
    %390 = vmatpush2.msra.mxu0 0.0
    %391 = vmatprep.subr.mxu0 0.0
    %392 = vmatpush2.msra.mxu0 0.0
    %393 = vmatprep.subr.mxu0 0.0
    %394 = vmatpush2.msra.mxu0 0.0
    %395 = vmatprep.subr.mxu0 0.0
    %396 = vmatpush2.msra.mxu0 0.0
    %397 = vmatprep.subr.mxu0 0.0
    %398 = vmatpush2.msra.mxu0 0.0
    %399 = vmatprep.subr.mxu0 0.0
    %400 = vmatpush2.msra.mxu0 0.0
    %401 = vmatprep.subr.mxu0 0.0
    %402 = vmatpush2.msra.mxu0 0.0
    %403 = vmatprep.subr.mxu0 0.0
    %404 = vmatpush2.msra.mxu0 0.0
    %405 = vmatprep.subr.mxu0 0.0
    %406 = vmatpush2.msra.mxu0 0.0
    %407 = vmatprep.subr.mxu0 0.0
    %408 = vmatpush2.msra.mxu0 0.0
    %409 = vmatprep.subr.mxu0 0.0
    %410 = vmatpush2.msra.mxu0 0.0
    %411 = vmatprep.subr.mxu0 0.0
    %412 = vmatpush2.msra.mxu0 0.0
    %413 = vmatprep.mubr.f32.mxu0 0.0
    %414 = vmatmul.mubr.f32.gmra.mxu0 %v347
    %v415 = vpop.f32.mrf.mxu0
    %v416 = vadd.f32 0.0, %v415
    %v417 = vpop.f32.mrf.mxu0
    %418 = vdwg.mxu0
    %v420 = vrot.slane %v416, 4
    %v422 = vadd.f32 %v127, %v420
    %v423 = vtanh.pop %v422
    %v424 = vadd.f32 %v423, 1.0
    %v425 = vmul.f32 %v424, 0.5
    %v426 = vsel %vm143, %v423, %v425
    %v428 = vrot.slane %v336, 6
    %v430 = vmul.f32 %v426, %v428
    %432 = vrot.lane.b32.xlu0 %v426, 64
    %v433 = vpop.permute.xlu0 %432
    %v435 = vmul.f32 %v426, %v433
    %437 = vrot.lane.b32.xlu0 %v435, 32
    %v438 = vpop.permute.xlu0 %437
    %v440 = vadd.f32 %v430, %v438
    %v441 = vtanh.pop %v440
    %443 = vrot.lane.b32.xlu0 %v441, 64
    %v444 = vpop.permute.xlu0 %443
    %v446 = vmul.f32 %v426, %v444
    %v448 = vrot.slane %v446, 4
    %449 = vrot.lane.b32.xlu0 %v448, 32
    %v450 = vpop.permute.xlu0 %449
    %v451 = vsel %vm144, %v450, 0
    %453 = vmatprep.subr.mxu0 0.0
    %454 = vmatpush1.msra.mxu0 0.0
    %455 = vmatprep.subr.mxu0 0.0
    %456 = vmatpush1.msra.mxu0 0.0
    %457 = vmatprep.subr.mxu0 0.0
    %458 = vmatpush1.msra.mxu0 0.0
    %459 = vmatprep.subr.mxu0 0.0
    %460 = vmatpush1.msra.mxu0 0.0
    %461 = vmatprep.subr.mxu0 0.0
    %462 = vmatpush1.msra.mxu0 0.0
    %463 = vmatprep.subr.mxu0 0.0
    %464 = vmatpush1.msra.mxu0 0.0
    %465 = vmatprep.subr.mxu0 0.0
    %466 = vmatpush1.msra.mxu0 0.0
    %467 = vmatprep.subr.mxu0 0.0
    %468 = vmatpush1.msra.mxu0 0.0
    %469 = vmatprep.subr.mxu0 0.0
    %470 = vmatpush1.msra.mxu0 0.0
    %471 = vmatprep.subr.mxu0 0.0
    %472 = vmatpush1.msra.mxu0 0.0
    %473 = vmatprep.subr.mxu0 0.0
    %474 = vmatpush1.msra.mxu0 0.0
    %475 = vmatprep.subr.mxu0 0.0
    %476 = vmatpush1.msra.mxu0 0.0
    %477 = vmatprep.subr.mxu0 0.0
    %478 = vmatpush1.msra.mxu0 %v138
    %479 = vmatprep.subr.mxu0 0.0
    %480 = vmatpush1.msra.mxu0 %v137
    %481 = vmatprep.subr.mxu0 0.0
    %482 = vmatpush1.msra.mxu0 %v136
    %483 = vmatprep.subr.mxu0 0.0
    %484 = vmatpush1.msra.mxu0 %v135
    %485 = vmatprep.subr.mxu0 0.0
    %486 = vmatpush2.msra.mxu0 0.0
    %487 = vmatprep.subr.mxu0 0.0
    %488 = vmatpush2.msra.mxu0 0.0
    %489 = vmatprep.subr.mxu0 0.0
    %490 = vmatpush2.msra.mxu0 0.0
    %491 = vmatprep.subr.mxu0 0.0
    %492 = vmatpush2.msra.mxu0 0.0
    %493 = vmatprep.subr.mxu0 0.0
    %494 = vmatpush2.msra.mxu0 0.0
    %495 = vmatprep.subr.mxu0 0.0
    %496 = vmatpush2.msra.mxu0 0.0
    %497 = vmatprep.subr.mxu0 0.0
    %498 = vmatpush2.msra.mxu0 0.0
    %499 = vmatprep.subr.mxu0 0.0
    %500 = vmatpush2.msra.mxu0 0.0
    %501 = vmatprep.subr.mxu0 0.0
    %502 = vmatpush2.msra.mxu0 0.0
    %503 = vmatprep.subr.mxu0 0.0
    %504 = vmatpush2.msra.mxu0 0.0
    %505 = vmatprep.subr.mxu0 0.0
    %506 = vmatpush2.msra.mxu0 0.0
    %507 = vmatprep.subr.mxu0 0.0
    %508 = vmatpush2.msra.mxu0 0.0
    %509 = vmatprep.subr.mxu0 0.0
    %510 = vmatpush2.msra.mxu0 0.0
    %511 = vmatprep.subr.mxu0 0.0
    %512 = vmatpush2.msra.mxu0 0.0
    %513 = vmatprep.subr.mxu0 0.0
    %514 = vmatpush2.msra.mxu0 0.0
    %515 = vmatprep.subr.mxu0 0.0
    %516 = vmatpush2.msra.mxu0 0.0
    %517 = vmatprep.mubr.f32.mxu0 0.0
    %518 = vmatmul.mubr.f32.gmra.mxu0 %v451
    %v519 = vpop.f32.mrf.mxu0
    %v520 = vadd.f32 0.0, %v519
    %v521 = vpop.f32.mrf.mxu0
    %522 = vdwg.mxu0
    %v524 = vrot.slane %v520, 2
    %v526 = vadd.f32 %v127, %v524
    %v527 = vtanh.pop %v526
    %v528 = vadd.f32 %v527, 1.0
    %v529 = vmul.f32 %v528, 0.5
    %v530 = vsel %vm143, %v527, %v529
    %v532 = vrot.slane %v440, 6
    %v534 = vmul.f32 %v530, %v532
    %536 = vrot.lane.b32.xlu0 %v530, 64
    %v537 = vpop.permute.xlu0 %536
    %v539 = vmul.f32 %v530, %v537
    %541 = vrot.lane.b32.xlu0 %v539, 32
    %v542 = vpop.permute.xlu0 %541
    %v544 = vadd.f32 %v534, %v542
    %v545 = vtanh.pop %v544
    %547 = vrot.lane.b32.xlu0 %v545, 64
    %v548 = vpop.permute.xlu0 %547
    %v550 = vmul.f32 %v530, %v548
    %v552 = vrot.slane %v550, 6
    %553 = vrot.lane.b32.xlu0 %v552, 32
    %v554 = vpop.permute.xlu0 %553
    %v555 = vsel %vm144, %v554, 0
    %557 = vmatprep.subr.mxu0 0.0
    %558 = vmatpush1.msra.mxu0 0.0
    %559 = vmatprep.subr.mxu0 0.0
    %560 = vmatpush1.msra.mxu0 0.0
    %561 = vmatprep.subr.mxu0 0.0
    %562 = vmatpush1.msra.mxu0 0.0
    %563 = vmatprep.subr.mxu0 0.0
    %564 = vmatpush1.msra.mxu0 0.0
    %565 = vmatprep.subr.mxu0 0.0
    %566 = vmatpush1.msra.mxu0 0.0
    %567 = vmatprep.subr.mxu0 0.0
    %568 = vmatpush1.msra.mxu0 0.0
    %569 = vmatprep.subr.mxu0 0.0
    %570 = vmatpush1.msra.mxu0 0.0
    %571 = vmatprep.subr.mxu0 0.0
    %572 = vmatpush1.msra.mxu0 0.0
    %573 = vmatprep.subr.mxu0 0.0
    %574 = vmatpush1.msra.mxu0 0.0
    %575 = vmatprep.subr.mxu0 0.0
    %576 = vmatpush1.msra.mxu0 0.0
    %577 = vmatprep.subr.mxu0 0.0
    %578 = vmatpush1.msra.mxu0 0.0
    %579 = vmatprep.subr.mxu0 0.0
    %580 = vmatpush1.msra.mxu0 0.0
    %581 = vmatprep.subr.mxu0 0.0
    %582 = vmatpush1.msra.mxu0 %v138
    %583 = vmatprep.subr.mxu0 0.0
    %584 = vmatpush1.msra.mxu0 %v137
    %585 = vmatprep.subr.mxu0 0.0
    %586 = vmatpush1.msra.mxu0 %v136
    %587 = vmatprep.subr.mxu0 0.0
    %588 = vmatpush1.msra.mxu0 %v135
    %589 = vmatprep.subr.mxu0 0.0
    %590 = vmatpush2.msra.mxu0 0.0
    %591 = vmatprep.subr.mxu0 0.0
    %592 = vmatpush2.msra.mxu0 0.0
    %593 = vmatprep.subr.mxu0 0.0
    %594 = vmatpush2.msra.mxu0 0.0
    %595 = vmatprep.subr.mxu0 0.0
    %596 = vmatpush2.msra.mxu0 0.0
    %597 = vmatprep.subr.mxu0 0.0
    %598 = vmatpush2.msra.mxu0 0.0
    %599 = vmatprep.subr.mxu0 0.0
    %600 = vmatpush2.msra.mxu0 0.0
    %601 = vmatprep.subr.mxu0 0.0
    %602 = vmatpush2.msra.mxu0 0.0
    %603 = vmatprep.subr.mxu0 0.0
    %604 = vmatpush2.msra.mxu0 0.0
    %605 = vmatprep.subr.mxu0 0.0
    %606 = vmatpush2.msra.mxu0 0.0
    %607 = vmatprep.subr.mxu0 0.0
    %608 = vmatpush2.msra.mxu0 0.0
    %609 = vmatprep.subr.mxu0 0.0
    %610 = vmatpush2.msra.mxu0 0.0
    %611 = vmatprep.subr.mxu0 0.0
    %612 = vmatpush2.msra.mxu0 0.0
    %613 = vmatprep.subr.mxu0 0.0
    %614 = vmatpush2.msra.mxu0 0.0
    %615 = vmatprep.subr.mxu0 0.0
    %616 = vmatpush2.msra.mxu0 0.0
    %617 = vmatprep.subr.mxu0 0.0
    %618 = vmatpush2.msra.mxu0 0.0
    %619 = vmatprep.subr.mxu0 0.0
    %620 = vmatpush2.msra.mxu0 0.0
    %621 = vmatprep.mubr.f32.mxu0 0.0
    %622 = vmatmul.mubr.f32.gmra.mxu0 %v555
    %v623 = vpop.f32.mrf.mxu0
    %v624 = vadd.f32 0.0, %v623
    %v625 = vpop.f32.mrf.mxu0
    %626 = vdwg.mxu0
    %v627 = vadd.f32 %v132, %v624
    %v628 = vtanh.pop %v627
    %v629 = vadd.f32 %v628, 1.0
    %v630 = vmul.f32 %v629, 0.5
    %v631 = vsel %vm143, %v628, %v630
    %v633 = vrot.slane %v544, 6
    %v635 = vmul.f32 %v631, %v633
    %637 = vrot.lane.b32.xlu0 %v631, 64
    %v638 = vpop.permute.xlu0 %637
    %v640 = vmul.f32 %v631, %v638
    %642 = vrot.lane.b32.xlu0 %v640, 32
    %v643 = vpop.permute.xlu0 %642
    %v645 = vadd.f32 %v635, %v643
    %v646 = vtanh.pop %v645
    %648 = vrot.lane.b32.xlu0 %v646, 64
    %v649 = vpop.permute.xlu0 %648
    %v651 = vmul.f32 %v631, %v649
    %653 = vrot.lane.b32.xlu0 %v651, 32
    %v654 = vpop.permute.xlu0 %653
    %v655 = vsel %vm144, %v654, 0
    %657 = vmatprep.subr.mxu0 0.0
    %658 = vmatpush1.msra.mxu0 0.0
    %659 = vmatprep.subr.mxu0 0.0
    %660 = vmatpush1.msra.mxu0 0.0
    %661 = vmatprep.subr.mxu0 0.0
    %662 = vmatpush1.msra.mxu0 0.0
    %663 = vmatprep.subr.mxu0 0.0
    %664 = vmatpush1.msra.mxu0 0.0
    %665 = vmatprep.subr.mxu0 0.0
    %666 = vmatpush1.msra.mxu0 0.0
    %667 = vmatprep.subr.mxu0 0.0
    %668 = vmatpush1.msra.mxu0 0.0
    %669 = vmatprep.subr.mxu0 0.0
    %670 = vmatpush1.msra.mxu0 0.0
    %671 = vmatprep.subr.mxu0 0.0
    %672 = vmatpush1.msra.mxu0 0.0
    %673 = vmatprep.subr.mxu0 0.0
    %674 = vmatpush1.msra.mxu0 0.0
    %675 = vmatprep.subr.mxu0 0.0
    %676 = vmatpush1.msra.mxu0 0.0
    %677 = vmatprep.subr.mxu0 0.0
    %678 = vmatpush1.msra.mxu0 0.0
    %679 = vmatprep.subr.mxu0 0.0
    %680 = vmatpush1.msra.mxu0 0.0
    %681 = vmatprep.subr.mxu0 0.0
    %682 = vmatpush1.msra.mxu0 %v138
    %683 = vmatprep.subr.mxu0 0.0
    %684 = vmatpush1.msra.mxu0 %v137
    %685 = vmatprep.subr.mxu0 0.0
    %686 = vmatpush1.msra.mxu0 %v136
    %687 = vmatprep.subr.mxu0 0.0
    %688 = vmatpush1.msra.mxu0 %v135
    %689 = vmatprep.subr.mxu0 0.0
    %690 = vmatpush2.msra.mxu0 0.0
    %691 = vmatprep.subr.mxu0 0.0
    %692 = vmatpush2.msra.mxu0 0.0
    %693 = vmatprep.subr.mxu0 0.0
    %694 = vmatpush2.msra.mxu0 0.0
    %695 = vmatprep.subr.mxu0 0.0
    %696 = vmatpush2.msra.mxu0 0.0
    %697 = vmatprep.subr.mxu0 0.0
    %698 = vmatpush2.msra.mxu0 0.0
    %699 = vmatprep.subr.mxu0 0.0
    %700 = vmatpush2.msra.mxu0 0.0
    %701 = vmatprep.subr.mxu0 0.0
    %702 = vmatpush2.msra.mxu0 0.0
    %703 = vmatprep.subr.mxu0 0.0
    %704 = vmatpush2.msra.mxu0 0.0
    %705 = vmatprep.subr.mxu0 0.0
    %706 = vmatpush2.msra.mxu0 0.0
    %707 = vmatprep.subr.mxu0 0.0
    %708 = vmatpush2.msra.mxu0 0.0
    %709 = vmatprep.subr.mxu0 0.0
    %710 = vmatpush2.msra.mxu0 0.0
    %711 = vmatprep.subr.mxu0 0.0
    %712 = vmatpush2.msra.mxu0 0.0
    %713 = vmatprep.subr.mxu0 0.0
    %714 = vmatpush2.msra.mxu0 0.0
    %715 = vmatprep.subr.mxu0 0.0
    %716 = vmatpush2.msra.mxu0 0.0
    %717 = vmatprep.subr.mxu0 0.0
    %718 = vmatpush2.msra.mxu0 0.0
    %719 = vmatprep.subr.mxu0 0.0
    %720 = vmatpush2.msra.mxu0 0.0
    %721 = vmatprep.mubr.f32.mxu0 0.0
    %722 = vmatmul.mubr.f32.gmra.mxu0 %v655
    %v723 = vpop.f32.mrf.mxu0
    %v724 = vadd.f32 0.0, %v723
    %v725 = vpop.f32.mrf.mxu0
    %726 = vdwg.mxu0
    %v728 = vrot.slane %v724, 6
    %v730 = vadd.f32 %v132, %v728
    %v731 = vtanh.pop %v730
    %v732 = vadd.f32 %v731, 1.0
    %v733 = vmul.f32 %v732, 0.5
    %v734 = vsel %vm143, %v731, %v733
    %v736 = vrot.slane %v645, 6
    %v738 = vmul.f32 %v734, %v736
    %740 = vrot.lane.b32.xlu0 %v734, 64
    %v741 = vpop.permute.xlu0 %740
    %v743 = vmul.f32 %v734, %v741
    %745 = vrot.lane.b32.xlu0 %v743, 32
    %v746 = vpop.permute.xlu0 %745
    %v748 = vadd.f32 %v738, %v746
    %v749 = vtanh.pop %v748
    %751 = vrot.lane.b32.xlu0 %v749, 64
    %v752 = vpop.permute.xlu0 %751
    %v754 = vmul.f32 %v734, %v752
    %v756 = vrot.slane %v754, 2
    %757 = vrot.lane.b32.xlu0 %v756, 32
    %v758 = vpop.permute.xlu0 %757
    %v759 = vsel %vm144, %v758, 0
    %761 = vmatprep.subr.mxu0 0.0
    %762 = vmatpush1.msra.mxu0 0.0
    %763 = vmatprep.subr.mxu0 0.0
    %764 = vmatpush1.msra.mxu0 0.0
    %765 = vmatprep.subr.mxu0 0.0
    %766 = vmatpush1.msra.mxu0 0.0
    %767 = vmatprep.subr.mxu0 0.0
    %768 = vmatpush1.msra.mxu0 0.0
    %769 = vmatprep.subr.mxu0 0.0
    %770 = vmatpush1.msra.mxu0 0.0
    %771 = vmatprep.subr.mxu0 0.0
    %772 = vmatpush1.msra.mxu0 0.0
    %773 = vmatprep.subr.mxu0 0.0
    %774 = vmatpush1.msra.mxu0 0.0
    %775 = vmatprep.subr.mxu0 0.0
    %776 = vmatpush1.msra.mxu0 0.0
    %777 = vmatprep.subr.mxu0 0.0
    %778 = vmatpush1.msra.mxu0 0.0
    %779 = vmatprep.subr.mxu0 0.0
    %780 = vmatpush1.msra.mxu0 0.0
    %781 = vmatprep.subr.mxu0 0.0
    %782 = vmatpush1.msra.mxu0 0.0
    %783 = vmatprep.subr.mxu0 0.0
    %784 = vmatpush1.msra.mxu0 0.0
    %785 = vmatprep.subr.mxu0 0.0
    %786 = vmatpush1.msra.mxu0 %v138
    %787 = vmatprep.subr.mxu0 0.0
    %788 = vmatpush1.msra.mxu0 %v137
    %789 = vmatprep.subr.mxu0 0.0
    %790 = vmatpush1.msra.mxu0 %v136
    %791 = vmatprep.subr.mxu0 0.0
    %792 = vmatpush1.msra.mxu0 %v135
    %793 = vmatprep.subr.mxu0 0.0
    %794 = vmatpush2.msra.mxu0 0.0
    %795 = vmatprep.subr.mxu0 0.0
    %796 = vmatpush2.msra.mxu0 0.0
    %797 = vmatprep.subr.mxu0 0.0
    %798 = vmatpush2.msra.mxu0 0.0
    %799 = vmatprep.subr.mxu0 0.0
    %800 = vmatpush2.msra.mxu0 0.0
    %801 = vmatprep.subr.mxu0 0.0
    %802 = vmatpush2.msra.mxu0 0.0
    %803 = vmatprep.subr.mxu0 0.0
    %804 = vmatpush2.msra.mxu0 0.0
    %805 = vmatprep.subr.mxu0 0.0
    %806 = vmatpush2.msra.mxu0 0.0
    %807 = vmatprep.subr.mxu0 0.0
    %808 = vmatpush2.msra.mxu0 0.0
    %809 = vmatprep.subr.mxu0 0.0
    %810 = vmatpush2.msra.mxu0 0.0
    %811 = vmatprep.subr.mxu0 0.0
    %812 = vmatpush2.msra.mxu0 0.0
    %813 = vmatprep.subr.mxu0 0.0
    %814 = vmatpush2.msra.mxu0 0.0
    %815 = vmatprep.subr.mxu0 0.0
    %816 = vmatpush2.msra.mxu0 0.0
    %817 = vmatprep.subr.mxu0 0.0
    %818 = vmatpush2.msra.mxu0 0.0
    %819 = vmatprep.subr.mxu0 0.0
    %820 = vmatpush2.msra.mxu0 0.0
    %821 = vmatprep.subr.mxu0 0.0
    %822 = vmatpush2.msra.mxu0 0.0
    %823 = vmatprep.subr.mxu0 0.0
    %824 = vmatpush2.msra.mxu0 0.0
    %825 = vmatprep.mubr.f32.mxu0 0.0
    %826 = vmatmul.mubr.f32.gmra.mxu0 %v759
    %v827 = vpop.f32.mrf.mxu0
    %v828 = vadd.f32 0.0, %v827
    %v829 = vpop.f32.mrf.mxu0
    %830 = vdwg.mxu0
    %v832 = vrot.slane %v828, 4
    %v834 = vadd.f32 %v132, %v832
    %v835 = vtanh.pop %v834
    %v836 = vadd.f32 %v835, 1.0
    %v837 = vmul.f32 %v836, 0.5
    %v838 = vsel %vm143, %v835, %v837
    %v840 = vrot.slane %v748, 6
    %v842 = vmul.f32 %v838, %v840
    %844 = vrot.lane.b32.xlu0 %v838, 64
    %v845 = vpop.permute.xlu0 %844
    %v847 = vmul.f32 %v838, %v845
    %849 = vrot.lane.b32.xlu0 %v847, 32
    %v850 = vpop.permute.xlu0 %849
    %v852 = vadd.f32 %v842, %v850
    %v853 = vtanh.pop %v852
    %855 = vrot.lane.b32.xlu0 %v853, 64
    %v856 = vpop.permute.xlu0 %855
    %v858 = vmul.f32 %v838, %v856
    %v860 = vrot.slane %v858, 4
    %861 = vrot.lane.b32.xlu0 %v860, 32
    %v862 = vpop.permute.xlu0 %861
    %v863 = vsel %vm144, %v862, 0
    %865 = vmatprep.subr.mxu0 0.0
    %866 = vmatpush1.msra.mxu0 0.0
    %867 = vmatprep.subr.mxu0 0.0
    %868 = vmatpush1.msra.mxu0 0.0
    %869 = vmatprep.subr.mxu0 0.0
    %870 = vmatpush1.msra.mxu0 0.0
    %871 = vmatprep.subr.mxu0 0.0
    %872 = vmatpush1.msra.mxu0 0.0
    %873 = vmatprep.subr.mxu0 0.0
    %874 = vmatpush1.msra.mxu0 0.0
    %875 = vmatprep.subr.mxu0 0.0
    %876 = vmatpush1.msra.mxu0 0.0
    %877 = vmatprep.subr.mxu0 0.0
    %878 = vmatpush1.msra.mxu0 0.0
    %879 = vmatprep.subr.mxu0 0.0
    %880 = vmatpush1.msra.mxu0 0.0
    %881 = vmatprep.subr.mxu0 0.0
    %882 = vmatpush1.msra.mxu0 0.0
    %883 = vmatprep.subr.mxu0 0.0
    %884 = vmatpush1.msra.mxu0 0.0
    %885 = vmatprep.subr.mxu0 0.0
    %886 = vmatpush1.msra.mxu0 0.0
    %887 = vmatprep.subr.mxu0 0.0
    %888 = vmatpush1.msra.mxu0 0.0
    %889 = vmatprep.subr.mxu0 0.0
    %890 = vmatpush1.msra.mxu0 %v138
    %891 = vmatprep.subr.mxu0 0.0
    %892 = vmatpush1.msra.mxu0 %v137
    %893 = vmatprep.subr.mxu0 0.0
    %894 = vmatpush1.msra.mxu0 %v136
    %895 = vmatprep.subr.mxu0 0.0
    %896 = vmatpush1.msra.mxu0 %v135
    %897 = vmatprep.subr.mxu0 0.0
    %898 = vmatpush2.msra.mxu0 0.0
    %899 = vmatprep.subr.mxu0 0.0
    %900 = vmatpush2.msra.mxu0 0.0
    %901 = vmatprep.subr.mxu0 0.0
    %902 = vmatpush2.msra.mxu0 0.0
    %903 = vmatprep.subr.mxu0 0.0
    %904 = vmatpush2.msra.mxu0 0.0
    %905 = vmatprep.subr.mxu0 0.0
    %906 = vmatpush2.msra.mxu0 0.0
    %907 = vmatprep.subr.mxu0 0.0
    %908 = vmatpush2.msra.mxu0 0.0
    %909 = vmatprep.subr.mxu0 0.0
    %910 = vmatpush2.msra.mxu0 0.0
    %911 = vmatprep.subr.mxu0 0.0
    %912 = vmatpush2.msra.mxu0 0.0
    %913 = vmatprep.subr.mxu0 0.0
    %914 = vmatpush2.msra.mxu0 0.0
    %915 = vmatprep.subr.mxu0 0.0
    %916 = vmatpush2.msra.mxu0 0.0
    %917 = vmatprep.subr.mxu0 0.0
    %918 = vmatpush2.msra.mxu0 0.0
    %919 = vmatprep.subr.mxu0 0.0
    %920 = vmatpush2.msra.mxu0 0.0
    %921 = vmatprep.subr.mxu0 0.0
    %922 = vmatpush2.msra.mxu0 0.0
    %923 = vmatprep.subr.mxu0 0.0
    %924 = vmatpush2.msra.mxu0 0.0
    %925 = vmatprep.subr.mxu0 0.0
    %926 = vmatpush2.msra.mxu0 0.0
    %927 = vmatprep.subr.mxu0 0.0
    %928 = vmatpush2.msra.mxu0 0.0
    %929 = vmatprep.mubr.f32.mxu0 0.0
    %930 = vmatmul.mubr.f32.gmra.mxu0 %v863
    %v931 = vpop.f32.mrf.mxu0
    %v932 = vadd.f32 0.0, %v931
    %v933 = vpop.f32.mrf.mxu0
    %934 = vdwg.mxu0
    %v936 = vrot.slane %v932, 2
    %v938 = vadd.f32 %v132, %v936
    %v939 = vtanh.pop %v938
    %v940 = vadd.f32 %v939, 1.0
    %v941 = vmul.f32 %v940, 0.5
    %v942 = vsel %vm143, %v939, %v941
    %v944 = vrot.slane %v852, 6
    %v946 = vmul.f32 %v942, %v944
    %948 = vrot.lane.b32.xlu0 %v942, 64
    %v949 = vpop.permute.xlu0 %948
    %v951 = vmul.f32 %v942, %v949
    %953 = vrot.lane.b32.xlu0 %v951, 32
    %v954 = vpop.permute.xlu0 %953
    %v956 = vadd.f32 %v946, %v954
    %v957 = vtanh.pop %v956
    %959 = vrot.lane.b32.xlu0 %v957, 64
    %v960 = vpop.permute.xlu0 %959
    %v962 = vmul.f32 %v942, %v960
    %v963 = vld [vmem:[%s4] sm:$0xff]
    %v964 = vld [vmem:[%s4 + $0x8] sm:$0xff]
    %v965 = vld [vmem:[%s4 + $0x10] sm:$0xff]
    %v966 = vld [vmem:[%s4 + $0x18] sm:$0xff]
    %v967 = vld [vmem:[%s5] sm:$0x1]
    %v969 = vlaneseq
    %v970 = vshrl.u32 %v969, 7
    %v971 = vsub.s32 0, %v970
    %v972 = vrot.slane %v967, %v971
    %v975 = vrot.slane %v962, 6
    %976 = vrot.lane.b32.xlu0 %v975, 32
    %v977 = vpop.permute.xlu0 %976
    %v978 = vsel %vm144, %v977, 0
    %980 = vmatprep.subr.mxu0 0.0
    %981 = vmatpush1.msra.mxu0 0.0
    %982 = vmatprep.subr.mxu0 0.0
    %983 = vmatpush1.msra.mxu0 0.0
    %984 = vmatprep.subr.mxu0 0.0
    %985 = vmatpush1.msra.mxu0 0.0
    %986 = vmatprep.subr.mxu0 0.0
    %987 = vmatpush1.msra.mxu0 0.0
    %988 = vmatprep.subr.mxu0 0.0
    %989 = vmatpush1.msra.mxu0 0.0
    %990 = vmatprep.subr.mxu0 0.0
    %991 = vmatpush1.msra.mxu0 0.0
    %992 = vmatprep.subr.mxu0 0.0
    %993 = vmatpush1.msra.mxu0 0.0
    %994 = vmatprep.subr.mxu0 0.0
    %995 = vmatpush1.msra.mxu0 0.0
    %996 = vmatprep.subr.mxu0 0.0
    %997 = vmatpush1.msra.mxu0 0.0
    %998 = vmatprep.subr.mxu0 0.0
    %999 = vmatpush1.msra.mxu0 0.0
    %1000 = vmatprep.subr.mxu0 0.0
    %1001 = vmatpush1.msra.mxu0 0.0
    %1002 = vmatprep.subr.mxu0 0.0
    %1003 = vmatpush1.msra.mxu0 0.0
    %1004 = vmatprep.subr.mxu0 0.0
    %1005 = vmatpush1.msra.mxu0 %v966
    %1006 = vmatprep.subr.mxu0 0.0
    %1007 = vmatpush1.msra.mxu0 %v965
    %1008 = vmatprep.subr.mxu0 0.0
    %1009 = vmatpush1.msra.mxu0 %v964
    %1010 = vmatprep.subr.mxu0 0.0
    %1011 = vmatpush1.msra.mxu0 %v963
    %1012 = vmatprep.subr.mxu0 0.0
    %1013 = vmatpush2.msra.mxu0 0.0
    %1014 = vmatprep.subr.mxu0 0.0
    %1015 = vmatpush2.msra.mxu0 0.0
    %1016 = vmatprep.subr.mxu0 0.0
    %1017 = vmatpush2.msra.mxu0 0.0
    %1018 = vmatprep.subr.mxu0 0.0
    %1019 = vmatpush2.msra.mxu0 0.0
    %1020 = vmatprep.subr.mxu0 0.0
    %1021 = vmatpush2.msra.mxu0 0.0
    %1022 = vmatprep.subr.mxu0 0.0
    %1023 = vmatpush2.msra.mxu0 0.0
    %1024 = vmatprep.subr.mxu0 0.0
    %1025 = vmatpush2.msra.mxu0 0.0
    %1026 = vmatprep.subr.mxu0 0.0
    %1027 = vmatpush2.msra.mxu0 0.0
    %1028 = vmatprep.subr.mxu0 0.0
    %1029 = vmatpush2.msra.mxu0 0.0
    %1030 = vmatprep.subr.mxu0 0.0
    %1031 = vmatpush2.msra.mxu0 0.0
    %1032 = vmatprep.subr.mxu0 0.0
    %1033 = vmatpush2.msra.mxu0 0.0
    %1034 = vmatprep.subr.mxu0 0.0
    %1035 = vmatpush2.msra.mxu0 0.0
    %1036 = vmatprep.subr.mxu0 0.0
    %1037 = vmatpush2.msra.mxu0 0.0
    %1038 = vmatprep.subr.mxu0 0.0
    %1039 = vmatpush2.msra.mxu0 0.0
    %1040 = vmatprep.subr.mxu0 0.0
    %1041 = vmatpush2.msra.mxu0 0.0
    %1042 = vmatprep.subr.mxu0 0.0
    %1043 = vmatpush2.msra.mxu0 0.0
    %1044 = vmatprep.mubr.f32.mxu0 0.0
    %1045 = vmatmul.mubr.f32.gmra.mxu0 %v978
    %v1046 = vpop.f32.mrf.mxu0
    %v1047 = vadd.f32 %v972, %v1046
    %v1048 = vpop.f32.mrf.mxu0
    %1049 = vdwg.mxu0
    %v1050 = vmax.f32 %v1047, 0.0
    %v1051 = vld [vmem:[%s6] sm:$0xff]
    %v1052 = vld [vmem:[%s6 + $0x8] sm:$0xff]
    %v1053 = vld [vmem:[%s6 + $0x10] sm:$0xff]
    %v1054 = vld [vmem:[%s6 + $0x18] sm:$0xff]
    %v1055 = vld [vmem:[%s6 + $0x20] sm:$0xff]
    %v1056 = vld [vmem:[%s6 + $0x28] sm:$0xff]
    %v1057 = vld [vmem:[%s6 + $0x30] sm:$0xff]
    %v1058 = vld [vmem:[%s6 + $0x38] sm:$0xff]
    %v1059 = vld [vmem:[%s6 + $0x40] sm:$0xff]
    %v1060 = vld [vmem:[%s6 + $0x48] sm:$0xff]
    %v1061 = vld [vmem:[%s6 + $0x50] sm:$0xff]
    %v1062 = vld [vmem:[%s6 + $0x58] sm:$0xff]
    %v1063 = vld [vmem:[%s6 + $0x60] sm:$0xff]
    %v1064 = vld [vmem:[%s6 + $0x68] sm:$0xff]
    %v1065 = vld [vmem:[%s6 + $0x70] sm:$0xff]
    %v1066 = vld [vmem:[%s6 + $0x78] sm:$0xff]
    %v1067 = vld [vmem:[%s7] sm:$0x1]
    %v1069 = vlaneseq
    %v1070 = vshrl.u32 %v1069, 7
    %v1071 = vsub.s32 0, %v1070
    %v1072 = vrot.slane %v1067, %v1071
    %1074 = vmatprep.subr.mxu0 0.0
    %1075 = vmatpush1.msra.mxu0 %v1066
    %1076 = vmatprep.subr.mxu0 0.0
    %1077 = vmatpush1.msra.mxu0 %v1065
    %1078 = vmatprep.subr.mxu0 0.0
    %1079 = vmatpush1.msra.mxu0 %v1064
    %1080 = vmatprep.subr.mxu0 0.0
    %1081 = vmatpush1.msra.mxu0 %v1063
    %1082 = vmatprep.subr.mxu0 0.0
    %1083 = vmatpush1.msra.mxu0 %v1062
    %1084 = vmatprep.subr.mxu0 0.0
    %1085 = vmatpush1.msra.mxu0 %v1061
    %1086 = vmatprep.subr.mxu0 0.0
    %1087 = vmatpush1.msra.mxu0 %v1060
    %1088 = vmatprep.subr.mxu0 0.0
    %1089 = vmatpush1.msra.mxu0 %v1059
    %1090 = vmatprep.subr.mxu0 0.0
    %1091 = vmatpush1.msra.mxu0 %v1058
    %1092 = vmatprep.subr.mxu0 0.0
    %1093 = vmatpush1.msra.mxu0 %v1057
    %1094 = vmatprep.subr.mxu0 0.0
    %1095 = vmatpush1.msra.mxu0 %v1056
    %1096 = vmatprep.subr.mxu0 0.0
    %1097 = vmatpush1.msra.mxu0 %v1055
    %1098 = vmatprep.subr.mxu0 0.0
    %1099 = vmatpush1.msra.mxu0 %v1054
    %1100 = vmatprep.subr.mxu0 0.0
    %1101 = vmatpush1.msra.mxu0 %v1053
    %1102 = vmatprep.subr.mxu0 0.0
    %1103 = vmatpush1.msra.mxu0 %v1052
    %1104 = vmatprep.subr.mxu0 0.0
    %1105 = vmatpush1.msra.mxu0 %v1051
    %1106 = vmatprep.subr.mxu0 0.0
    %1107 = vmatpush2.msra.mxu0 0.0
    %1108 = vmatprep.subr.mxu0 0.0
    %1109 = vmatpush2.msra.mxu0 0.0
    %1110 = vmatprep.subr.mxu0 0.0
    %1111 = vmatpush2.msra.mxu0 0.0
    %1112 = vmatprep.subr.mxu0 0.0
    %1113 = vmatpush2.msra.mxu0 0.0
    %1114 = vmatprep.subr.mxu0 0.0
    %1115 = vmatpush2.msra.mxu0 0.0
    %1116 = vmatprep.subr.mxu0 0.0
    %1117 = vmatpush2.msra.mxu0 0.0
    %1118 = vmatprep.subr.mxu0 0.0
    %1119 = vmatpush2.msra.mxu0 0.0
    %1120 = vmatprep.subr.mxu0 0.0
    %1121 = vmatpush2.msra.mxu0 0.0
    %1122 = vmatprep.subr.mxu0 0.0
    %1123 = vmatpush2.msra.mxu0 0.0
    %1124 = vmatprep.subr.mxu0 0.0
    %1125 = vmatpush2.msra.mxu0 0.0
    %1126 = vmatprep.subr.mxu0 0.0
    %1127 = vmatpush2.msra.mxu0 0.0
    %1128 = vmatprep.subr.mxu0 0.0
    %1129 = vmatpush2.msra.mxu0 0.0
    %1130 = vmatprep.subr.mxu0 0.0
    %1131 = vmatpush2.msra.mxu0 0.0
    %1132 = vmatprep.subr.mxu0 0.0
    %1133 = vmatpush2.msra.mxu0 0.0
    %1134 = vmatprep.subr.mxu0 0.0
    %1135 = vmatpush2.msra.mxu0 0.0
    %1136 = vmatprep.subr.mxu0 0.0
    %1137 = vmatpush2.msra.mxu0 0.0
    %1138 = vmatprep.mubr.f32.mxu0 0.0
    %1139 = vmatmul.mubr.f32.gmra.mxu0 %v1050
    %v1140 = vpop.f32.mrf.mxu0
    %v1141 = vadd.f32 %v1072, %v1140
    %v1142 = vpop.f32.mrf.mxu0
    %1143 = vdwg.mxu0
    %v1144 = vmax.f32 %v1141, 0.0
    %v1145 = vld [vmem:[%s8] sm:$0xff]
    %v1146 = vld [vmem:[%s8 + $0x8] sm:$0xff]
    %v1147 = vld [vmem:[%s8 + $0x10] sm:$0xff]
    %v1148 = vld [vmem:[%s8 + $0x18] sm:$0xff]
    %v1149 = vld [vmem:[%s8 + $0x20] sm:$0xff]
    %v1150 = vld [vmem:[%s8 + $0x28] sm:$0xff]
    %v1151 = vld [vmem:[%s8 + $0x30] sm:$0xff]
    %v1152 = vld [vmem:[%s8 + $0x38] sm:$0xff]
    %v1153 = vld [vmem:[%s9] sm:$0x1]
    %v1155 = vlaneseq
    %v1156 = vshrl.u32 %v1155, 7
    %v1157 = vsub.s32 0, %v1156
    %v1158 = vrot.slane %v1153, %v1157
    %vm1160 = vcmask 523264
    %v1162 = vsel %vm1160, %v1144, 0
    %1164 = vmatprep.subr.mxu0 0.0
    %1165 = vmatpush1.msra.mxu0 0.0
    %1166 = vmatprep.subr.mxu0 0.0
    %1167 = vmatpush1.msra.mxu0 0.0
    %1168 = vmatprep.subr.mxu0 0.0
    %1169 = vmatpush1.msra.mxu0 0.0
    %1170 = vmatprep.subr.mxu0 0.0
    %1171 = vmatpush1.msra.mxu0 0.0
    %1172 = vmatprep.subr.mxu0 0.0
    %1173 = vmatpush1.msra.mxu0 0.0
    %1174 = vmatprep.subr.mxu0 0.0
    %1175 = vmatpush1.msra.mxu0 0.0
    %1176 = vmatprep.subr.mxu0 0.0
    %1177 = vmatpush1.msra.mxu0 0.0
    %1178 = vmatprep.subr.mxu0 0.0
    %1179 = vmatpush1.msra.mxu0 0.0
    %1180 = vmatprep.subr.mxu0 0.0
    %1181 = vmatpush1.msra.mxu0 %v1152
    %1182 = vmatprep.subr.mxu0 0.0
    %1183 = vmatpush1.msra.mxu0 %v1151
    %1184 = vmatprep.subr.mxu0 0.0
    %1185 = vmatpush1.msra.mxu0 %v1150
    %1186 = vmatprep.subr.mxu0 0.0
    %1187 = vmatpush1.msra.mxu0 %v1149
    %1188 = vmatprep.subr.mxu0 0.0
    %1189 = vmatpush1.msra.mxu0 %v1148
    %1190 = vmatprep.subr.mxu0 0.0
    %1191 = vmatpush1.msra.mxu0 %v1147
    %1192 = vmatprep.subr.mxu0 0.0
    %1193 = vmatpush1.msra.mxu0 %v1146
    %1194 = vmatprep.subr.mxu0 0.0
    %1195 = vmatpush1.msra.mxu0 %v1145
    %1196 = vmatprep.subr.mxu0 0.0
    %1197 = vmatpush2.msra.mxu0 0.0
    %1198 = vmatprep.subr.mxu0 0.0
    %1199 = vmatpush2.msra.mxu0 0.0
    %1200 = vmatprep.subr.mxu0 0.0
    %1201 = vmatpush2.msra.mxu0 0.0
    %1202 = vmatprep.subr.mxu0 0.0
    %1203 = vmatpush2.msra.mxu0 0.0
    %1204 = vmatprep.subr.mxu0 0.0
    %1205 = vmatpush2.msra.mxu0 0.0
    %1206 = vmatprep.subr.mxu0 0.0
    %1207 = vmatpush2.msra.mxu0 0.0
    %1208 = vmatprep.subr.mxu0 0.0
    %1209 = vmatpush2.msra.mxu0 0.0
    %1210 = vmatprep.subr.mxu0 0.0
    %1211 = vmatpush2.msra.mxu0 0.0
    %1212 = vmatprep.subr.mxu0 0.0
    %1213 = vmatpush2.msra.mxu0 0.0
    %1214 = vmatprep.subr.mxu0 0.0
    %1215 = vmatpush2.msra.mxu0 0.0
    %1216 = vmatprep.subr.mxu0 0.0
    %1217 = vmatpush2.msra.mxu0 0.0
    %1218 = vmatprep.subr.mxu0 0.0
    %1219 = vmatpush2.msra.mxu0 0.0
    %1220 = vmatprep.subr.mxu0 0.0
    %1221 = vmatpush2.msra.mxu0 0.0
    %1222 = vmatprep.subr.mxu0 0.0
    %1223 = vmatpush2.msra.mxu0 0.0
    %1224 = vmatprep.subr.mxu0 0.0
    %1225 = vmatpush2.msra.mxu0 0.0
    %1226 = vmatprep.subr.mxu0 0.0
    %1227 = vmatpush2.msra.mxu0 0.0
    %1228 = vmatprep.mubr.f32.mxu0 0.0
    %1229 = vmatmul.mubr.f32.gmra.mxu0 %v1162
    %v1230 = vpop.f32.mrf.mxu0
    %v1231 = vadd.f32 %v1158, %v1230
    %v1232 = vpop.f32.mrf.mxu0
    %1233 = vdwg.mxu0
    %v1234 = vmax.f32 %v1231, 0.0
    %v1235 = vld [vmem:[%s10] sm:$0xff]
    %v1236 = vld [vmem:[%s10 + $0x8] sm:$0xff]
    %v1237 = vld [vmem:[%s10 + $0x10] sm:$0xff]
    %v1238 = vld [vmem:[%s10 + $0x18] sm:$0xff]
    %v1239 = vld [vmem:[%s11] sm:$0x1]
    %v1241 = vlaneseq
    %v1242 = vshrl.u32 %v1241, 7
    %v1243 = vsub.s32 0, %v1242
    %v1244 = vrot.slane %v1239, %v1243
    %v1247 = vsel %vm144, %v1234, 0
    %1249 = vmatprep.subr.mxu0 0.0
    %1250 = vmatpush1.msra.mxu0 0.0
    %1251 = vmatprep.subr.mxu0 0.0
    %1252 = vmatpush1.msra.mxu0 0.0
    %1253 = vmatprep.subr.mxu0 0.0
    %1254 = vmatpush1.msra.mxu0 0.0
    %1255 = vmatprep.subr.mxu0 0.0
    %1256 = vmatpush1.msra.mxu0 0.0
    %1257 = vmatprep.subr.mxu0 0.0
    %1258 = vmatpush1.msra.mxu0 0.0
    %1259 = vmatprep.subr.mxu0 0.0
    %1260 = vmatpush1.msra.mxu0 0.0
    %1261 = vmatprep.subr.mxu0 0.0
    %1262 = vmatpush1.msra.mxu0 0.0
    %1263 = vmatprep.subr.mxu0 0.0
    %1264 = vmatpush1.msra.mxu0 0.0
    %1265 = vmatprep.subr.mxu0 0.0
    %1266 = vmatpush1.msra.mxu0 0.0
    %1267 = vmatprep.subr.mxu0 0.0
    %1268 = vmatpush1.msra.mxu0 0.0
    %1269 = vmatprep.subr.mxu0 0.0
    %1270 = vmatpush1.msra.mxu0 0.0
    %1271 = vmatprep.subr.mxu0 0.0
    %1272 = vmatpush1.msra.mxu0 0.0
    %1273 = vmatprep.subr.mxu0 0.0
    %1274 = vmatpush1.msra.mxu0 %v1238
    %1275 = vmatprep.subr.mxu0 0.0
    %1276 = vmatpush1.msra.mxu0 %v1237
    %1277 = vmatprep.subr.mxu0 0.0
    %1278 = vmatpush1.msra.mxu0 %v1236
    %1279 = vmatprep.subr.mxu0 0.0
    %1280 = vmatpush1.msra.mxu0 %v1235
    %1281 = vmatprep.subr.mxu0 0.0
    %1282 = vmatpush2.msra.mxu0 0.0
    %1283 = vmatprep.subr.mxu0 0.0
    %1284 = vmatpush2.msra.mxu0 0.0
    %1285 = vmatprep.subr.mxu0 0.0
    %1286 = vmatpush2.msra.mxu0 0.0
    %1287 = vmatprep.subr.mxu0 0.0
    %1288 = vmatpush2.msra.mxu0 0.0
    %1289 = vmatprep.subr.mxu0 0.0
    %1290 = vmatpush2.msra.mxu0 0.0
    %1291 = vmatprep.subr.mxu0 0.0
    %1292 = vmatpush2.msra.mxu0 0.0
    %1293 = vmatprep.subr.mxu0 0.0
    %1294 = vmatpush2.msra.mxu0 0.0
    %1295 = vmatprep.subr.mxu0 0.0
    %1296 = vmatpush2.msra.mxu0 0.0
    %1297 = vmatprep.subr.mxu0 0.0
    %1298 = vmatpush2.msra.mxu0 0.0
    %1299 = vmatprep.subr.mxu0 0.0
    %1300 = vmatpush2.msra.mxu0 0.0
    %1301 = vmatprep.subr.mxu0 0.0
    %1302 = vmatpush2.msra.mxu0 0.0
    %1303 = vmatprep.subr.mxu0 0.0
    %1304 = vmatpush2.msra.mxu0 0.0
    %1305 = vmatprep.subr.mxu0 0.0
    %1306 = vmatpush2.msra.mxu0 0.0
    %1307 = vmatprep.subr.mxu0 0.0
    %1308 = vmatpush2.msra.mxu0 0.0
    %1309 = vmatprep.subr.mxu0 0.0
    %1310 = vmatpush2.msra.mxu0 0.0
    %1311 = vmatprep.subr.mxu0 0.0
    %1312 = vmatpush2.msra.mxu0 0.0
    %1313 = vmatprep.mubr.f32.mxu0 0.0
    %1314 = vmatmul.mubr.f32.gmra.mxu0 %v1247
    %v1315 = vpop.f32.mrf.mxu0
    %v1316 = vadd.f32 %v1244, %v1315
    %v1317 = vpop.f32.mrf.mxu0
    %1318 = vdwg.mxu0
    %vm1319 = vcmask 74752
    %1320 = vst.msk [vmem:[#allocation2] sm:$0x3] %vm1319, %v1316
    // Predicated region
    $region50: #{tpu_custom_call.1} parent=1 // pred_check
      _
    $region51: #{tpu_custom_call.1} parent=1 // pred_check_branch
      %1322 = sbr.rel (0) target = $region53
    $region52: #{tpu_custom_call.1} parent=1 // pred_region
      %s1324 = ssub.s32 32, 32
      %1325 = vsyncadd [#allocation3], %s1324
      %s1327 = sshll.u32 [#allocation2], 4
      %s1328 = int_to_ptr.vmem [resolvable:$true] %s1327
      %1330 = dma.vmem_to_hbm [thread:$0]  %s1328, 32, %s12, [#allocation3]
    $region53: #{tpu_custom_call.1} parent=1 // pred_fallthru
      _
    // Predicated region
    $region54: #{tpu_custom_call.1} parent=1 // pred_check
      _
    $region55: #{tpu_custom_call.1} parent=1 // pred_check_branch
      %1332 = sbr.rel (0) target = $region57
    $region56: #{tpu_custom_call.1} parent=1 // pred_region
      %1333 = dma.done [#allocation3], 32
    $region57: #{tpu_custom_call.1} parent=1 // pred_fallthru
      _
    %1334 = vsyncpa [#allocation3], 1

</llo_original>
